<compile_context>
chip_gen: v5e
topology: v5e:2x2
jax: 0.10.0
libtpu: 0.0.40
codegen_flags: <defaults>
</compile_context>

<pallas_src>
import functools

import jax
import jax.numpy as jnp
import numpy as np
from jax.experimental import pallas as pl
from jax.experimental.pallas import tpu as pltpu

_BN_EPS = 1e-5


# --------------------------------------------------------------------------
# Tile / VMEM helpers (chip adaptive)
# --------------------------------------------------------------------------
def _vmem_capacity_bytes():
    try:
        cap = getattr(pltpu.get_tpu_info(), "vmem_capacity_bytes", None)
        if cap:
            return int(cap)
    except Exception:
        pass
    return 64 * 1024 * 1024          # v7x-safe default


def _pick_row_tile(n, pref, align):
    """Row tile: multiple of `align` sublanes (or the full extent), capped so
    the "parallel" grid axis has >= 2 blocks (keeps both v7x TCs busy)."""
    if n <= align:
        return n
    tn = min(pref, n)
    if n >= 2 * align:
        tn = min(tn, max(align, ((n // 2) // align) * align))
    return max(align, (tn // align) * align)


def _pick_k_tile(n, pref):
    """Contraction tile: a multiple of 128 that divides n exactly (so no
    ragged K block can feed uninitialized data into the accumulator),
    else fall back to the full extent."""
    pref = max(128, (pref // 128) * 128)
    if n <= pref:
        return n
    t = pref
    while t >= 128:
        if n % t == 0:
            return t
        t -= 128
    # TODO(synk): mask ragged K blocks instead of falling back to full-K.
    return n


# --------------------------------------------------------------------------
# Fused DGNN layer kernel:  phi + spmm (K-tiled) + concat-fold + full MLP
# --------------------------------------------------------------------------
def _dgnn_layer_kernel(*refs, m, d, num_stages, relu_out):
    """Grid = (row blocks i, K blocks k).  Per (i, k):
         acc[:, j*d:(j+1)*d] += adj_blk @ x_k^(j+1)   for j = 0..m-1
         acc[:, m*d]         += row_sum(adj_blk)       (== adj @ ones, exact)
       At the last K block the eval-mode MLP runs in-register:
         stage 0:  BN(concat[x, agg]) folded to affine + split Linear
         stage j:  BN -> ReLU -> (Dropout = id in eval) -> Linear
       and the (optionally ReLU'd) layer output is stored once per row block.
    """
    n_in = 10 + 4 * (num_stages - 1)
    (adj_ref, xk_ref, xrow_ref,
     sx_ref, tx_ref, sa_ref, ta_ref,
     w0x_ref, w0a_ref, b0_ref) = refs[:10]
    stage_refs = [refs[10 + 4 * j: 14 + 4 * j] for j in range(num_stages - 1)]
    out_ref = refs[n_in]
    acc_ref = refs[n_in + 1]

    k = pl.program_id(1)

    @pl.when(k == 0)
    def _init():
        acc_ref[...] = jnp.zeros_like(acc_ref)

    adj_blk = adj_ref[...]                       # (tn, tk)  compute dtype
    xk = xk_ref[...]                             # (tk, d)   f32 (VPU math in f32)
    cdt = adj_blk.dtype

    # Store-as-you-go: only x and the running power stay live.  Each power's
    # partial product lands at lane offset j*d (lane-dense when d % 128 == 0).
    p = xk
    for j in range(m):
        if j > 0:
            p = p * xk
        acc_ref[:, pl.ds(j * d, d)] += jnp.dot(
            adj_blk, p.astype(cdt), preferred_element_type=jnp.float32)
    # phi's leading ones column == adj @ 1 == row-sum, accumulated exactly per
    # K tile (XLU reduction; does not burn an MXU column or break alignment).
    acc_ref[:, pl.ds(m * d, 1)] += jnp.sum(
        adj_blk.astype(jnp.float32), axis=1, keepdims=True)

    @pl.when(k == pl.num_programs(1) - 1)
    def _finalize():
        agg = acc_ref[...]                              # (tn, m*d+1)  f32
        xr = xrow_ref[...].astype(jnp.float32)          # (tn, d)
        # Stage 0: eval BatchNorm folded to per-feature affine; torch.cat is
        # folded by splitting the first Linear's weight into W_x / W_agg.
        hx = xr * sx_ref[...] + tx_ref[...]
        ha = agg * sa_ref[...] + ta_ref[...]
        h = (jnp.dot(hx.astype(cdt), w0x_ref[...],
                     preferred_element_type=jnp.float32)
             + jnp.dot(ha.astype(cdt), w0a_ref[...],
                       preferred_element_type=jnp.float32)
             + b0_ref[...])
        # Remaining MLP stages.
        for s_ref, t_ref, w_ref, b_ref in stage_refs:
            a = jnp.maximum(h * s_ref[...] + t_ref[...], 0.0)
            h = jnp.dot(a.astype(cdt), w_ref[...],
                        preferred_element_type=jnp.float32) + b_ref[...]
        if relu_out:                 # inter-layer F.relu fused into the store
            h = jnp.maximum(h, 0.0)
        out_ref[...] = h.astype(out_ref.dtype)


def dgnn_layer_pallas(x, adj_c, layer_params, m, *, relu_out,
                      tile_n=512, tile_k=512, compute_dtype=jnp.float32):
    n, d = x.shape
    assert adj_c.shape == (n, n)
    agg_w = m * d + 1
    mlp = layer_params["mlp"]
    num_stages = len(mlp)
    out_last = mlp[-1]["w"].shape[1]
    cdt = jnp.dtype(compute_dtype)

    # ---- fold eval-mode BatchNorm into per-feature affine; split stage 0 ----
    def bn_affine(sp):
        scale = (sp["gamma"] / jnp.sqrt(sp["var"] + _BN_EPS)).astype(jnp.float32)
        shift = (sp["beta"] - sp["mean"] * scale).astype(jnp.float32)
        return scale, shift

    sp0 = mlp[0]
    scale0, shift0 = bn_affine(sp0)
    h1 = sp0["w"].shape[1]
    # torch stage-0 feature order:  [x (d) | agg_ones (1) | agg_p1..pm (m*d)]
    # kernel agg layout:            [agg_p1..pm (m*d) | agg_ones (1)]
    sx = scale0[:d].reshape(1, d)
    tx = shift0[:d].reshape(1, d)
    sa = jnp.concatenate([scale0[d + 1:], scale0[d:d + 1]]).reshape(1, agg_w)
    ta = jnp.concatenate([shift0[d + 1:], shift0[d:d + 1]]).reshape(1, agg_w)
    w0 = sp0["w"]
    w0x = w0[:d].astype(cdt)
    w0a = jnp.concatenate([w0[d + 1:], w0[d:d + 1]], axis=0).astype(cdt)
    b0 = sp0["b"].reshape(1, h1).astype(jnp.float32)

    const_args = [sx, tx, sa, ta, w0x, w0a, b0]
    h_prev = h1
    for j in range(1, num_stages):
        sp = mlp[j]
        s_j, t_j = bn_affine(sp)
        const_args += [s_j.reshape(1, h_prev), t_j.reshape(1, h_prev),
                       sp["w"].astype(cdt),
                       sp["b"].reshape(1, -1).astype(jnp.float32)]
        h_prev = sp["w"].shape[1]
    const_specs = [pl.BlockSpec(tuple(a.shape), lambda i, k: (0, 0))
                   for a in const_args]

    # ---- tiles & VMEM budget (chip adaptive; v7x 64 MiB safe) ----
    align = 16 if cdt == jnp.dtype(jnp.bfloat16) else 8
    tn = _pick_row_tile(n, tile_n, align)
    tk = _pick_k_tile(n, tile_k)

    c_item = cdt.itemsize
    x_item = x.dtype.itemsize
    w_bytes = sum(int(np.prod(a.shape)) * a.dtype.itemsize for a in const_args)
    cap = _vmem_capacity_bytes()
    budget = max(32 * 1024 * 1024, int(0.70 * cap))

    def _need(tn_):
        return (2 * tn_ * tk * c_item            # adj block (double buffered)
                + 2 * tk * d * x_item            # x K block
                + 2 * tn_ * d * x_item           # x row block
                + 2 * tn_ * out_last * x_item    # output block
                + 2 * w_bytes                    # weights / BN affines
                + tn_ * agg_w * 4                # f32 accumulator scratch
                + (2 << 20))                     # compiler-internal margin

    while _need(tn) > budget and tn > align:
        tn = max(align, ((tn // 2) // align) * align)

    grid = (pl.cdiv(n, tn), n // tk)

    in_specs = [pl.BlockSpec((tn, tk), lambda i, k: (i, k)),   # adj tile
                pl.BlockSpec((tk, d), lambda i, k: (k, 0)),    # x K tile (powers)
                pl.BlockSpec((tn, d), lambda i, k: (i, 0)),    # x row tile ('cat')
                ] + const_specs

    mlp_flops = 2 * n * (d + agg_w) * h1
    hp = h1
    for j in range(1, num_stages):
        ho = mlp[j]["w"].shape[1]
        mlp_flops += 2 * n * hp * ho
        hp = ho
    cost = pl.CostEstimate(
        flops=int(2 * n * n * agg_w + n * d * max(m - 1, 0) + mlp_flops),
        transcendentals=0,
        bytes_accessed=int(n * n * c_item + 2 * n * d * x_item
                           + w_bytes + n * out_last * x_item))

    kernel = functools.partial(_dgnn_layer_kernel, m=m, d=d,
                               num_stages=num_stages, relu_out=relu_out)
    return pl.pallas_call(
        kernel,
        out_shape=jax.ShapeDtypeStruct((n, out_last), x.dtype),
        grid=grid,
        in_specs=in_specs,
        out_specs=pl.BlockSpec((tn, out_last), lambda i, k: (i, 0)),
        scratch_shapes=[pltpu.VMEM((tn, agg_w), jnp.float32)],
        compiler_params=pltpu.CompilerParams(
            dimension_semantics=("parallel", "arbitrary"),
            vmem_limit_bytes=int(budget)),
        cost_estimate=cost,
    )(adj_c, x, x, *const_args)


def exp_graph_nn_nd_pallas(node_features, adj, params, m, *,
                           tile_n=512, tile_k=512, compute_dtype=jnp.float32):
    """Eval-mode forward of ExpGraphNN_ND: one fused Pallas kernel per layer."""
    x = node_features
    # Cast adj once (bf16 halves the dominant N^2 HBM read; no-op for f32).
    adj_c = adj.astype(compute_dtype)
    for i, lp in enumerate(params):
        x = dgnn_layer_pallas(x, adj_c, lp, m,
                              relu_out=(i + 1 < len(params)),
                              tile_n=tile_n, tile_k=tile_k,
                              compute_dtype=compute_dtype)
    return x, x                                   # (x, support)


# --------------------------------------------------------------------------
# Pure-JAX reference mirroring the PyTorch module
# --------------------------------------------------------------------------
def phi_ref(x, m):
    parts = [jnp.ones((x.shape[0], 1), x.dtype)]
    for i in range(1, m + 1):
        parts.append(x ** i)
    return jnp.concatenate(parts, axis=1)


def exp_graph_nn_nd_ref(node_features, adj, params, m):
    hp = jax.lax.Precision.HIGHEST
    x = node_features
    for i, lp in enumerate(params):
        xp = phi_ref(x, m)
        agg = jnp.dot(adj, xp, precision=hp)
        h = jnp.concatenate([x, agg], axis=1)
        for j, sp in enumerate(lp["mlp"]):
            a = (h - sp["mean"]) / jnp.sqrt(sp["var"] + _BN_EPS) * sp["gamma"] + sp["beta"]
            if j > 0:
                a = jnp.maximum(a, 0.0)
            h = jnp.dot(a, sp["w"], precision=hp) + sp["b"]
        x = h
        if i + 1 < len(params):
            x = jnp.maximum(x, 0.0)
    return x, x


if __name__ == "__main__":
    key = jax.random.PRNGKey(0)
    N, D, M_POW = 256, 16, 3
    PHI_F = 1 + M_POW * D          # 49

    key, kx, ka = jax.random.split(key, 3)
    x = 0.5 * jax.random.normal(kx, (N, D), dtype=jnp.float32)
    # Dense adjacency (stand-in for torch.spmm's edge_mat), self loops, row-normalized.
    a = (jax.random.uniform(ka, (N, N)) < 0.1).astype(jnp.float32)
    a = a + jnp.eye(N, dtype=jnp.float32)
    adj = a / jnp.sum(a, axis=1, keepdims=True)

    def init_mlp(key, in_dim, out_dims):
        sub = []
        dims = [in_dim] + list(out_dims)
        for j in range(len(out_dims)):
            key, k1, k2, k3, k4, k5, k6 = jax.random.split(key, 7)
            d_in, d_out = dims[j], dims[j + 1]
            sub.append(dict(
                gamma=jax.random.uniform(k1, (d_in,), jnp.float32, 0.8, 1.2),
                beta=0.1 * jax.random.normal(k2, (d_in,), jnp.float32),
                mean=0.1 * jax.random.normal(k3, (d_in,), jnp.float32),
                var=jax.random.uniform(k4, (d_in,), jnp.float32, 0.5, 1.5),
                w=jax.random.normal(k5, (d_in, d_out), jnp.float32) / np.sqrt(d_in),
                b=0.1 * jax.random.normal(k6, (d_out,), jnp.float32),
            ))
        return key, sub

    # Two DGNN layers, agg='cat': (16 -> MLP[65 -> 32 -> 16]) then
    # (16 -> MLP[65 -> 16 -> 8]).
    params = []
    key, mlp0 = init_mlp(key, D + PHI_F, [32, 16])
    params.append(dict(mlp=mlp0))
    key, mlp1 = init_mlp(key, 16 + (1 + M_POW * 16), [16, 8])
    params.append(dict(mlp=mlp1))

    ref_out, ref_support = exp_graph_nn_nd_ref(x, adj, params, M_POW)

    # f32 path (strict check).  tile_n=64, tile_k=128 -> grid (4, 2): exercises
    # both the megacore-parallel row axis and the K-tiled accumulation.
    out, support = exp_graph_nn_nd_pallas(x, adj, params, M_POW,
                                          tile_n=64, tile_k=128)
    jax.block_until_ready(out)
    assert out.shape == (N, 8), out.shape
    np.testing.assert_allclose(np.asarray(out), np.asarray(ref_out),
                               rtol=1e-2, atol=1e-2)
    np.testing.assert_allclose(np.asarray(support), np.asarray(ref_support),
                               rtol=1e-2, atol=1e-2)

    # bf16 matmul operands with f32 accumulation (production path); loose
    # sanity check against the f32 reference.
    out_bf16, _ = exp_graph_nn_nd_pallas(x, adj, params, M_POW,
                                         tile_n=64, tile_k=128,
                                         compute_dtype=jnp.bfloat16)
    jax.block_until_ready(out_bf16)
    np.testing.assert_allclose(np.asarray(out_bf16), np.asarray(ref_out),
                               rtol=1e-1, atol=1e-1)

    print("KERNEL_OK")
</pallas_src>

<mosaic_0001>
module attributes {stable_mosaic.version = 11 : i64} {
  func.func @_dgnn_layer_kernel(%arg0: i32, %arg1: i32, %arg2: memref<64x128xf32, #tpu.memory_space<vmem>>, %arg3: memref<128x16xf32, #tpu.memory_space<vmem>>, %arg4: memref<64x16xf32, #tpu.memory_space<vmem>>, %arg5: memref<1x16xf32, #tpu.memory_space<vmem>>, %arg6: memref<1x16xf32, #tpu.memory_space<vmem>>, %arg7: memref<1x49xf32, #tpu.memory_space<vmem>>, %arg8: memref<1x49xf32, #tpu.memory_space<vmem>>, %arg9: memref<16x32xf32, #tpu.memory_space<vmem>>, %arg10: memref<49x32xf32, #tpu.memory_space<vmem>>, %arg11: memref<1x32xf32, #tpu.memory_space<vmem>>, %arg12: memref<1x32xf32, #tpu.memory_space<vmem>>, %arg13: memref<1x32xf32, #tpu.memory_space<vmem>>, %arg14: memref<32x16xf32, #tpu.memory_space<vmem>>, %arg15: memref<1x16xf32, #tpu.memory_space<vmem>>, %arg16: memref<64x16xf32, #tpu.memory_space<vmem>>, %arg17: memref<64x49xf32, #tpu.memory_space<vmem>>) attributes {dimension_semantics = [#tpu.dimension_semantics<parallel>, #tpu.dimension_semantics<arbitrary>], iteration_bounds = array<i64: 4, 2>, scalar_prefetch = 0 : i64, scratch_operands = 1 : i64, tpu.core_type = #tpu.core_type<tc>, window_params = [{transform_indices = @transform_0, window_bounds = array<i64: 64, 128>}, {transform_indices = @transform_1, window_bounds = array<i64: 128, 16>}, {transform_indices = @transform_2, window_bounds = array<i64: 64, 16>}, {pipeline_mode = #tpu.pipeline_mode<synchronous>, transform_indices = @transform_3, window_bounds = array<i64: 1, 16>}, {pipeline_mode = #tpu.pipeline_mode<synchronous>, transform_indices = @transform_4, window_bounds = array<i64: 1, 16>}, {pipeline_mode = #tpu.pipeline_mode<synchronous>, transform_indices = @transform_5, window_bounds = array<i64: 1, 49>}, {pipeline_mode = #tpu.pipeline_mode<synchronous>, transform_indices = @transform_6, window_bounds = array<i64: 1, 49>}, {pipeline_mode = #tpu.pipeline_mode<synchronous>, transform_indices = @transform_7, window_bounds = array<i64: 16, 32>}, {pipeline_mode = #tpu.pipeline_mode<synchronous>, transform_indices = @transform_8, window_bounds = array<i64: 49, 32>}, {pipeline_mode = #tpu.pipeline_mode<synchronous>, transform_indices = @transform_9, window_bounds = array<i64: 1, 32>}, {pipeline_mode = #tpu.pipeline_mode<synchronous>, transform_indices = @transform_10, window_bounds = array<i64: 1, 32>}, {pipeline_mode = #tpu.pipeline_mode<synchronous>, transform_indices = @transform_11, window_bounds = array<i64: 1, 32>}, {pipeline_mode = #tpu.pipeline_mode<synchronous>, transform_indices = @transform_12, window_bounds = array<i64: 32, 16>}, {pipeline_mode = #tpu.pipeline_mode<synchronous>, transform_indices = @transform_13, window_bounds = array<i64: 1, 16>}, {transform_indices = @transform_14, window_bounds = array<i64: 64, 16>}]} {
    %c0_i32 = arith.constant 0 : i32
    %0 = arith.cmpi eq, %arg1, %c0_i32 : i32
    %1 = arith.extui %0 : i1 to i32
    %c0_i32_0 = arith.constant 0 : i32
    %2 = arith.cmpi ne, %1, %c0_i32_0 : i32
    scf.if %2 {
      %cst_21 = arith.constant 0.000000e+00 : f32
      %27 = vector.broadcast %cst_21 : f32 to vector<64x49xf32>
      %c0_22 = arith.constant 0 : index
      %c0_23 = arith.constant 0 : index
      %28 = vector.load %arg17[%c0_22, %c0_23] : memref<64x49xf32, #tpu.memory_space<vmem>>, vector<64x49xf32>
      tpu.vector_store %arg17[%c0_22, %c0_23], %27 {strides = array<i32>} : memref<64x49xf32, #tpu.memory_space<vmem>>, vector<64x49xf32>,
    } else {
    }
    %c0 = arith.constant 0 : index
    %c0_1 = arith.constant 0 : index
    %3 = vector.load %arg2[%c0, %c0_1] : memref<64x128xf32, #tpu.memory_space<vmem>>, vector<64x128xf32>
    %c0_2 = arith.constant 0 : index
    %c0_3 = arith.constant 0 : index
    %4 = vector.load %arg3[%c0_2, %c0_3] : memref<128x16xf32, #tpu.memory_space<vmem>>, vector<128x16xf32>
    %c0_4 = arith.constant 0 : index
    %c0_5 = arith.constant 0 : index
    %5 = vector.load %arg17[%c0_4, %c0_5] : memref<64x49xf32, #tpu.memory_space<vmem>>, vector<64x16xf32>
    %cst = arith.constant dense<0.000000e+00> : vector<64x16xf32>
    %6 = tpu.matmul %3, %4, %cst {dimension_numbers = #tpu.dot_dimension_numbers<[1], [0], [0], [1], [0, 0, 1, 1], [], []>} : vector<64x128xf32>, vector<128x16xf32>, vector<64x16xf32> -> vector<64x16xf32>
    %7 = arith.addf %5, %6 : vector<64x16xf32>
    %c0_6 = arith.constant 0 : index
    %c0_7 = arith.constant 0 : index
    %8 = vector.load %arg17[%c0_6, %c0_7] : memref<64x49xf32, #tpu.memory_space<vmem>>, vector<64x16xf32>
    tpu.vector_store %arg17[%c0_6, %c0_7], %7 {strides = array<i32>} : memref<64x49xf32, #tpu.memory_space<vmem>>, vector<64x16xf32>,
    %9 = arith.mulf %4, %4 : vector<128x16xf32>
    %c0_8 = arith.constant 0 : index
    %c16 = arith.constant 16 : index
    %10 = vector.load %arg17[%c0_8, %c16] : memref<64x49xf32, #tpu.memory_space<vmem>>, vector<64x16xf32>
    %cst_9 = arith.constant dense<0.000000e+00> : vector<64x16xf32>
    %11 = tpu.matmul %3, %9, %cst_9 {dimension_numbers = #tpu.dot_dimension_numbers<[1], [0], [0], [1], [0, 0, 1, 1], [], []>} : vector<64x128xf32>, vector<128x16xf32>, vector<64x16xf32> -> vector<64x16xf32>
    %12 = arith.addf %10, %11 : vector<64x16xf32>
    %c0_10 = arith.constant 0 : index
    %c16_11 = arith.constant 16 : index
    %13 = vector.load %arg17[%c0_10, %c16_11] : memref<64x49xf32, #tpu.memory_space<vmem>>, vector<64x16xf32>
    tpu.vector_store %arg17[%c0_10, %c16_11], %12 {strides = array<i32>} : memref<64x49xf32, #tpu.memory_space<vmem>>, vector<64x16xf32>,
    %14 = arith.mulf %9, %4 : vector<128x16xf32>
    %c0_12 = arith.constant 0 : index
    %c32 = arith.constant 32 : index
    %15 = vector.load %arg17[%c0_12, %c32] : memref<64x49xf32, #tpu.memory_space<vmem>>, vector<64x16xf32>
    %cst_13 = arith.constant dense<0.000000e+00> : vector<64x16xf32>
    %16 = tpu.matmul %3, %14, %cst_13 {dimension_numbers = #tpu.dot_dimension_numbers<[1], [0], [0], [1], [0, 0, 1, 1], [], []>} : vector<64x128xf32>, vector<128x16xf32>, vector<64x16xf32> -> vector<64x16xf32>
    %17 = arith.addf %15, %16 : vector<64x16xf32>
    %c0_14 = arith.constant 0 : index
    %c32_15 = arith.constant 32 : index
    %18 = vector.load %arg17[%c0_14, %c32_15] : memref<64x49xf32, #tpu.memory_space<vmem>>, vector<64x16xf32>
    tpu.vector_store %arg17[%c0_14, %c32_15], %17 {strides = array<i32>} : memref<64x49xf32, #tpu.memory_space<vmem>>, vector<64x16xf32>,
    %c0_16 = arith.constant 0 : index
    %c48 = arith.constant 48 : index
    %19 = vector.load %arg17[%c0_16, %c48] : memref<64x49xf32, #tpu.memory_space<vmem>>, vector<64x1xf32>
    %cst_17 = arith.constant dense<0.000000e+00> : vector<64xf32>
    %20 = vector.multi_reduction <add>, %3, %cst_17 [1] : vector<64x128xf32> to vector<64xf32>
    %21 = vector.shape_cast %20 : vector<64xf32> to vector<64x1xf32>
    %22 = arith.addf %19, %21 : vector<64x1xf32>
    %c0_18 = arith.constant 0 : index
    %c48_19 = arith.constant 48 : index
    %23 = vector.load %arg17[%c0_18, %c48_19] : memref<64x49xf32, #tpu.memory_space<vmem>>, vector<64x1xf32>
    tpu.vector_store %arg17[%c0_18, %c48_19], %22 {strides = array<i32>} : memref<64x49xf32, #tpu.memory_space<vmem>>, vector<64x1xf32>,
    %c1_i32 = arith.constant 1 : i32
    %24 = arith.cmpi eq, %arg1, %c1_i32 : i32
    %25 = arith.extui %24 : i1 to i32
    %c0_i32_20 = arith.constant 0 : i32
    %26 = arith.cmpi ne, %25, %c0_i32_20 : i32
    scf.if %26 {
      %c0_21 = arith.constant 0 : index
      %c0_22 = arith.constant 0 : index
      %27 = vector.load %arg17[%c0_21, %c0_22] : memref<64x49xf32, #tpu.memory_space<vmem>>, vector<64x49xf32>
      %c0_23 = arith.constant 0 : index
      %c0_24 = arith.constant 0 : index
      %28 = vector.load %arg4[%c0_23, %c0_24] : memref<64x16xf32, #tpu.memory_space<vmem>>, vector<64x16xf32>
      %c0_25 = arith.constant 0 : index
      %c0_26 = arith.constant 0 : index
      %29 = vector.load %arg5[%c0_25, %c0_26] : memref<1x16xf32, #tpu.memory_space<vmem>>, vector<1x16xf32>
      %30 = vector.broadcast %29 : vector<1x16xf32> to vector<64x16xf32>
      %31 = arith.mulf %28, %30 : vector<64x16xf32>
      %c0_27 = arith.constant 0 : index
      %c0_28 = arith.constant 0 : index
      %32 = vector.load %arg6[%c0_27, %c0_28] : memref<1x16xf32, #tpu.memory_space<vmem>>, vector<1x16xf32>
      %33 = vector.broadcast %32 : vector<1x16xf32> to vector<64x16xf32>
      %34 = arith.addf %31, %33 : vector<64x16xf32>
      %c0_29 = arith.constant 0 : index
      %c0_30 = arith.constant 0 : index
      %35 = vector.load %arg7[%c0_29, %c0_30] : memref<1x49xf32, #tpu.memory_space<vmem>>, vector<1x49xf32>
      %36 = vector.broadcast %35 : vector<1x49xf32> to vector<64x49xf32>
      %37 = arith.mulf %27, %36 : vector<64x49xf32>
      %c0_31 = arith.constant 0 : index
      %c0_32 = arith.constant 0 : index
      %38 = vector.load %arg8[%c0_31, %c0_32] : memref<1x49xf32, #tpu.memory_space<vmem>>, vector<1x49xf32>
      %39 = vector.broadcast %38 : vector<1x49xf32> to vector<64x49xf32>
      %40 = arith.addf %37, %39 : vector<64x49xf32>
      %c0_33 = arith.constant 0 : index
      %c0_34 = arith.constant 0 : index
      %41 = vector.load %arg9[%c0_33, %c0_34] : memref<16x32xf32, #tpu.memory_space<vmem>>, vector<16x32xf32>
      %cst_35 = arith.constant dense<0.000000e+00> : vector<64x32xf32>
      %42 = tpu.matmul %34, %41, %cst_35 {dimension_numbers = #tpu.dot_dimension_numbers<[1], [0], [0], [1], [0, 0, 1, 1], [], []>} : vector<64x16xf32>, vector<16x32xf32>, vector<64x32xf32> -> vector<64x32xf32>
      %c0_36 = arith.constant 0 : index
      %c0_37 = arith.constant 0 : index
      %43 = vector.load %arg10[%c0_36, %c0_37] : memref<49x32xf32, #tpu.memory_space<vmem>>, vector<49x32xf32>
      %cst_38 = arith.constant dense<0.000000e+00> : vector<64x32xf32>
      %44 = tpu.matmul %40, %43, %cst_38 {dimension_numbers = #tpu.dot_dimension_numbers<[1], [0], [0], [1], [0, 0, 1, 1], [], []>} : vector<64x49xf32>, vector<49x32xf32>, vector<64x32xf32> -> vector<64x32xf32>
      %45 = arith.addf %42, %44 : vector<64x32xf32>
      %c0_39 = arith.constant 0 : index
      %c0_40 = arith.constant 0 : index
      %46 = vector.load %arg11[%c0_39, %c0_40] : memref<1x32xf32, #tpu.memory_space<vmem>>, vector<1x32xf32>
      %47 = vector.broadcast %46 : vector<1x32xf32> to vector<64x32xf32>
      %48 = arith.addf %45, %47 : vector<64x32xf32>
      %c0_41 = arith.constant 0 : index
      %c0_42 = arith.constant 0 : index
      %49 = vector.load %arg12[%c0_41, %c0_42] : memref<1x32xf32, #tpu.memory_space<vmem>>, vector<1x32xf32>
      %50 = vector.broadcast %49 : vector<1x32xf32> to vector<64x32xf32>
      %51 = arith.mulf %48, %50 : vector<64x32xf32>
      %c0_43 = arith.constant 0 : index
      %c0_44 = arith.constant 0 : index
      %52 = vector.load %arg13[%c0_43, %c0_44] : memref<1x32xf32, #tpu.memory_space<vmem>>, vector<1x32xf32>
      %53 = vector.broadcast %52 : vector<1x32xf32> to vector<64x32xf32>
      %54 = arith.addf %51, %53 : vector<64x32xf32>
      %cst_45 = arith.constant 0.000000e+00 : f32
      %55 = vector.broadcast %cst_45 : f32 to vector<64x32xf32>
      %56 = arith.maximumf %54, %55 : vector<64x32xf32>
      %c0_46 = arith.constant 0 : index
      %c0_47 = arith.constant 0 : index
      %57 = vector.load %arg14[%c0_46, %c0_47] : memref<32x16xf32, #tpu.memory_space<vmem>>, vector<32x16xf32>
      %cst_48 = arith.constant dense<0.000000e+00> : vector<64x16xf32>
      %58 = tpu.matmul %56, %57, %cst_48 {dimension_numbers = #tpu.dot_dimension_numbers<[1], [0], [0], [1], [0, 0, 1, 1], [], []>} : vector<64x32xf32>, vector<32x16xf32>, vector<64x16xf32> -> vector<64x16xf32>
      %c0_49 = arith.constant 0 : index
      %c0_50 = arith.constant 0 : index
      %59 = vector.load %arg15[%c0_49, %c0_50] : memref<1x16xf32, #tpu.memory_space<vmem>>, vector<1x16xf32>
      %60 = vector.broadcast %59 : vector<1x16xf32> to vector<64x16xf32>
      %61 = arith.addf %58, %60 : vector<64x16xf32>
      %cst_51 = arith.constant 0.000000e+00 : f32
      %62 = vector.broadcast %cst_51 : f32 to vector<64x16xf32>
      %63 = arith.maximumf %61, %62 : vector<64x16xf32>
      %c0_52 = arith.constant 0 : index
      %c0_53 = arith.constant 0 : index
      %64 = vector.load %arg16[%c0_52, %c0_53] : memref<64x16xf32, #tpu.memory_space<vmem>>, vector<64x16xf32>
      tpu.vector_store %arg16[%c0_52, %c0_53], %63 {strides = array<i32>} : memref<64x16xf32, #tpu.memory_space<vmem>>, vector<64x16xf32>,
    } else {
    }
    return
  }
  func.func @transform_0(%arg0: i32, %arg1: i32) -> (i32, i32) {
    %c0_i32 = arith.constant 0 : i32
    return %arg0, %arg1 : i32, i32
  }
  func.func @transform_1(%arg0: i32, %arg1: i32) -> (i32, i32) {
    %c0_i32 = arith.constant 0 : i32
    %c0_i32_0 = arith.constant 0 : i32
    return %arg1, %c0_i32 : i32, i32
  }
  func.func @transform_2(%arg0: i32, %arg1: i32) -> (i32, i32) {
    %c0_i32 = arith.constant 0 : i32
    %c0_i32_0 = arith.constant 0 : i32
    return %arg0, %c0_i32 : i32, i32
  }
  func.func @transform_3(%arg0: i32, %arg1: i32) -> (i32, i32) {
    %c0_i32 = arith.constant 0 : i32
    %c0_i32_0 = arith.constant 0 : i32
    %c0_i32_1 = arith.constant 0 : i32
    return %c0_i32, %c0_i32_0 : i32, i32
  }
  func.func @transform_4(%arg0: i32, %arg1: i32) -> (i32, i32) {
    %c0_i32 = arith.constant 0 : i32
    %c0_i32_0 = arith.constant 0 : i32
    %c0_i32_1 = arith.constant 0 : i32
    return %c0_i32, %c0_i32_0 : i32, i32
  }
  func.func @transform_5(%arg0: i32, %arg1: i32) -> (i32, i32) {
    %c0_i32 = arith.constant 0 : i32
    %c0_i32_0 = arith.constant 0 : i32
    %c0_i32_1 = arith.constant 0 : i32
    return %c0_i32, %c0_i32_0 : i32, i32
  }
  func.func @transform_6(%arg0: i32, %arg1: i32) -> (i32, i32) {
    %c0_i32 = arith.constant 0 : i32
    %c0_i32_0 = arith.constant 0 : i32
    %c0_i32_1 = arith.constant 0 : i32
    return %c0_i32, %c0_i32_0 : i32, i32
  }
  func.func @transform_7(%arg0: i32, %arg1: i32) -> (i32, i32) {
    %c0_i32 = arith.constant 0 : i32
    %c0_i32_0 = arith.constant 0 : i32
    %c0_i32_1 = arith.constant 0 : i32
    return %c0_i32, %c0_i32_0 : i32, i32
  }
  func.func @transform_8(%arg0: i32, %arg1: i32) -> (i32, i32) {
    %c0_i32 = arith.constant 0 : i32
    %c0_i32_0 = arith.constant 0 : i32
    %c0_i32_1 = arith.constant 0 : i32
    return %c0_i32, %c0_i32_0 : i32, i32
  }
  func.func @transform_9(%arg0: i32, %arg1: i32) -> (i32, i32) {
    %c0_i32 = arith.constant 0 : i32
    %c0_i32_0 = arith.constant 0 : i32
    %c0_i32_1 = arith.constant 0 : i32
    return %c0_i32, %c0_i32_0 : i32, i32
  }
  func.func @transform_10(%arg0: i32, %arg1: i32) -> (i32, i32) {
    %c0_i32 = arith.constant 0 : i32
    %c0_i32_0 = arith.constant 0 : i32
    %c0_i32_1 = arith.constant 0 : i32
    return %c0_i32, %c0_i32_0 : i32, i32
  }
  func.func @transform_11(%arg0: i32, %arg1: i32) -> (i32, i32) {
    %c0_i32 = arith.constant 0 : i32
    %c0_i32_0 = arith.constant 0 : i32
    %c0_i32_1 = arith.constant 0 : i32
    return %c0_i32, %c0_i32_0 : i32, i32
  }
  func.func @transform_12(%arg0: i32, %arg1: i32) -> (i32, i32) {
    %c0_i32 = arith.constant 0 : i32
    %c0_i32_0 = arith.constant 0 : i32
    %c0_i32_1 = arith.constant 0 : i32
    return %c0_i32, %c0_i32_0 : i32, i32
  }
  func.func @transform_13(%arg0: i32, %arg1: i32) -> (i32, i32) {
    %c0_i32 = arith.constant 0 : i32
    %c0_i32_0 = arith.constant 0 : i32
    %c0_i32_1 = arith.constant 0 : i32
    return %c0_i32, %c0_i32_0 : i32, i32
  }
  func.func @transform_14(%arg0: i32, %arg1: i32) -> (i32, i32) {
    %c0_i32 = arith.constant 0 : i32
    %c0_i32_0 = arith.constant 0 : i32
    return %arg0, %c0_i32 : i32, i32
  }
}

</mosaic_0001>

<llo_original>
// kernel: tpu_custom_call.1
$region0: #{tpu_custom_call.1}
  #allocation0 [shape = 'u32[]', space=smem, size = 0x4, offset = 0x4, fixed_abs, tag = 'smem constant byte address 0x4 - core index']
  #allocation1 [shape = 'u32[72,128]{1,0:T(1,128)}', space=vmem, size = 0x9000, scoped, tag = 'internal scratch']
  #allocation2 [shape = 'f32[64,49]{1,0:T(8,128)}', space=vmem, size = 0x8000, scoped, tag = 'scratch operand']
  %s0 = inlined_call_operand.vmem [shape: f32[256,256], index: 0, kind: input, shape index: {}]
  %s1 = inlined_call_operand.vmem [shape: f32[256,16], index: 1, kind: input, shape index: {}]
  %s2 = inlined_call_operand.vmem [shape: f32[256,16], index: 2, kind: input, shape index: {}]
  %s3 = inlined_call_operand.vmem [shape: f32[1,16], index: 3, kind: input, shape index: {}]
  %s4 = inlined_call_operand.vmem [shape: f32[1,16], index: 4, kind: input, shape index: {}]
  %s5 = inlined_call_operand.vmem [shape: f32[1,49], index: 5, kind: input, shape index: {}]
  %s6 = inlined_call_operand.vmem [shape: f32[1,49], index: 6, kind: input, shape index: {}]
  %s7 = inlined_call_operand.vmem [shape: f32[16,32], index: 7, kind: input, shape index: {}]
  %s8 = inlined_call_operand.vmem [shape: f32[49,32], index: 8, kind: input, shape index: {}]
  %s9 = inlined_call_operand.vmem [shape: f32[1,32], index: 9, kind: input, shape index: {}]
  %s10 = inlined_call_operand.vmem [shape: f32[1,32], index: 10, kind: input, shape index: {}]
  %s11 = inlined_call_operand.vmem [shape: f32[1,32], index: 11, kind: input, shape index: {}]
  %s12 = inlined_call_operand.vmem [shape: f32[32,16], index: 12, kind: input, shape index: {}]
  %s13 = inlined_call_operand.vmem [shape: f32[1,16], index: 13, kind: input, shape index: {}]
  %s14 = inlined_call_operand.vmem [shape: f32[256,16], index: 14, kind: output, shape index: {}]
  %s15 = sld [smem:[#allocation0]]
  $region135: #{tpu_custom_call.1} parent=0
    _
  %s17 = ssub.s32 1, %s15
  %s18 = scalar_select 0, %s17, %s15
  $region1: #{tpu_custom_call.1} parent=0
    #allocation3 [shape = 'u8[65536]{0}', space=vmem, size = 0x10000, scoped, tag = 'input window, operand 0']
    loop: start=0, step=1, limit=10
    $region2: #{tpu_custom_call.1} parent=1 // loop_pre_header
      _
    $region3: #{tpu_custom_call.1} parent=1 // loop_header
      %s20 = sphi 0, %s24
      %p21 = scmp.ge.s32.totalorder %s20, 10
      %s27 = sphi 0, %s39
      %s28 = sphi 0, %s35
      %s29 = sphi 0, %s27
      %s30 = sphi 0, %s28
      %s31 = sphi 0, %s29
      %s32 = sphi 0, %s30
      %s44 = sphi 0, %s46
      %s47 = sphi 0, %s44
      %s48 = sphi 0, %s47
      %s64 = sphi 0, %s48
      %s70 = sphi 0, %s72
      %s73 = sphi 0, %s70
      %s74 = sphi 0, %s73
      %s90 = sphi 0, %s74
      %s96 = sphi 0, %s98
      %s99 = sphi 0, %s96
      %s100 = sphi 0, %s99
      %s116 = sphi 0, %s100
      %s120 = sphi 0, %s120
      %s122 = sphi 0, %s120
      %s123 = sphi 0, %s122
      %s137 = sphi 0, %s123
      %s141 = sphi 0, %s141
      %s143 = sphi 0, %s141
      %s144 = sphi 0, %s143
      %s158 = sphi 0, %s144
      %s162 = sphi 0, %s162
      %s164 = sphi 0, %s162
      %s165 = sphi 0, %s164
      %s179 = sphi 0, %s165
      %s183 = sphi 0, %s183
      %s185 = sphi 0, %s183
      %s186 = sphi 0, %s185
      %s200 = sphi 0, %s186
      %s204 = sphi 0, %s204
      %s206 = sphi 0, %s204
      %s207 = sphi 0, %s206
      %s221 = sphi 0, %s207
      %s225 = sphi 0, %s225
      %s227 = sphi 0, %s225
      %s228 = sphi 0, %s227
      %s242 = sphi 0, %s228
      %s246 = sphi 0, %s246
      %s248 = sphi 0, %s246
      %s249 = sphi 0, %s248
      %s263 = sphi 0, %s249
      %s267 = sphi 0, %s267
      %s269 = sphi 0, %s267
      %s270 = sphi 0, %s269
      %s284 = sphi 0, %s270
      %s288 = sphi 0, %s288
      %s290 = sphi 0, %s288
      %s291 = sphi 0, %s290
      %s305 = sphi 0, %s291
      %s309 = sphi 0, %s309
      %s311 = sphi 0, %s309
      %s312 = sphi 0, %s311
      %s326 = sphi 0, %s312
      %s330 = sphi 0, %s330
      %s332 = sphi 0, %s330
      %s333 = sphi 0, %s332
      %s347 = sphi 0, %s333
      %s353 = sphi 0, %s355
      %s356 = sphi 0, %s353
      %s357 = sphi 0, %s356
      %s373 = sphi 0, %s357
    $region4: #{tpu_custom_call.1} parent=1 // loop_header_branch
      %23 = sbr.rel (%p21) target = $region8
    $region5: #{tpu_custom_call.1} parent=1 // loop_body
      %s25 = ssub.s32 %s20, 1
      %s26 = ssub.s32 %s20, 2
      %s33 = sadd.s32 1, %s28
      %p34 = scmp.ge.s32.totalorder %s33, 2
      %s35 = scalar_select %p34, 0, %s33
      %s36 = sadd.s32 1, %s27
      %s37 = scalar_select %p34, %s36, %s27
      %p38 = scmp.ge.s32.totalorder %s37, 4
      %s39 = scalar_select %p38, 0, %s37
      %s40 = ssub.s32 %s27, %s39
      %s41 = ssub.s32 %s28, %s35
      %s42 = sor.u32 %s40, %s41
      %p43 = scmp.eq.s32.totalorder %s42, 0
      %s45 = sadd.s32 %s44, 1
      %s46 = scalar_select %p43, %s44, %s45
      %p49 = pneg %p43
      %p50 = scmp.eq.s32.totalorder %s20, 7
      %p51 = por %p49, %p50
      %p52 = scmp.ne.s32.totalorder %s44, %s47
      %p53 = scmp.eq.s32.totalorder %s20, 0
      %p54 = por %p52, %p53
      %p55 = scmp.ne.s32.totalorder %s44, %s47
      %p56 = scmp.eq.s32.totalorder %s25, 7
      %p57 = por %p55, %p56
      %p58 = scmp.ne.s32.totalorder %s47, %s48
      %p59 = scmp.eq.s32.totalorder %s25, 0
      %p60 = por %p58, %p59
      %p61 = scmp.ne.s32.totalorder %s47, %s48
      %p62 = scmp.eq.s32.totalorder %s26, 7
      %p63 = por %p61, %p62
      %p65 = scmp.ne.s32.totalorder %s48, %s64
      %p66 = scmp.eq.s32.totalorder %s26, 0
      %p67 = por %p65, %p66
      %s68 = ssub.s32 %s28, %s35
      %p69 = scmp.eq.s32.totalorder %s68, 0
      %s71 = sadd.s32 %s70, 1
      %s72 = scalar_select %p69, %s70, %s71
      %p75 = pneg %p69
      %p76 = scmp.eq.s32.totalorder %s20, 7
      %p77 = por %p75, %p76
      %p78 = scmp.ne.s32.totalorder %s70, %s73
      %p79 = scmp.eq.s32.totalorder %s20, 0
      %p80 = por %p78, %p79
      %p81 = scmp.ne.s32.totalorder %s70, %s73
      %p82 = scmp.eq.s32.totalorder %s25, 7
      %p83 = por %p81, %p82
      %p84 = scmp.ne.s32.totalorder %s73, %s74
      %p85 = scmp.eq.s32.totalorder %s25, 0
      %p86 = por %p84, %p85
      %p87 = scmp.ne.s32.totalorder %s73, %s74
      %p88 = scmp.eq.s32.totalorder %s26, 7
      %p89 = por %p87, %p88
      %p91 = scmp.ne.s32.totalorder %s74, %s90
      %p92 = scmp.eq.s32.totalorder %s26, 0
      %p93 = por %p91, %p92
      %s94 = ssub.s32 %s27, %s39
      %p95 = scmp.eq.s32.totalorder %s94, 0
      %s97 = sadd.s32 %s96, 1
      %s98 = scalar_select %p95, %s96, %s97
      %p101 = pneg %p95
      %p102 = scmp.eq.s32.totalorder %s20, 7
      %p103 = por %p101, %p102
      %p104 = scmp.ne.s32.totalorder %s96, %s99
      %p105 = scmp.eq.s32.totalorder %s20, 0
      %p106 = por %p104, %p105
      %p107 = scmp.ne.s32.totalorder %s96, %s99
      %p108 = scmp.eq.s32.totalorder %s25, 7
      %p109 = por %p107, %p108
      %p110 = scmp.ne.s32.totalorder %s99, %s100
      %p111 = scmp.eq.s32.totalorder %s25, 0
      %p112 = por %p110, %p111
      %p113 = scmp.ne.s32.totalorder %s99, %s100
      %p114 = scmp.eq.s32.totalorder %s26, 7
      %p115 = por %p113, %p114
      %p117 = scmp.ne.s32.totalorder %s100, %s116
      %p118 = scmp.eq.s32.totalorder %s26, 0
      %p119 = por %p117, %p118
      %s121 = sadd.s32 %s120, 1
      %p124 = scmp.eq.s32.totalorder %s20, 7
      %p125 = scmp.ne.s32.totalorder %s120, %s122
      %p126 = scmp.eq.s32.totalorder %s20, 0
      %p127 = por %p125, %p126
      %p128 = scmp.ne.s32.totalorder %s120, %s122
      %p129 = scmp.eq.s32.totalorder %s25, 7
      %p130 = por %p128, %p129
      %p131 = scmp.ne.s32.totalorder %s122, %s123
      %p132 = scmp.eq.s32.totalorder %s25, 0
      %p133 = por %p131, %p132
      %p134 = scmp.ne.s32.totalorder %s122, %s123
      %p135 = scmp.eq.s32.totalorder %s26, 7
      %p136 = por %p134, %p135
      %p138 = scmp.ne.s32.totalorder %s123, %s137
      %p139 = scmp.eq.s32.totalorder %s26, 0
      %p140 = por %p138, %p139
      %s142 = sadd.s32 %s141, 1
      %p145 = scmp.eq.s32.totalorder %s20, 7
      %p146 = scmp.ne.s32.totalorder %s141, %s143
      %p147 = scmp.eq.s32.totalorder %s20, 0
      %p148 = por %p146, %p147
      %p149 = scmp.ne.s32.totalorder %s141, %s143
      %p150 = scmp.eq.s32.totalorder %s25, 7
      %p151 = por %p149, %p150
      %p152 = scmp.ne.s32.totalorder %s143, %s144
      %p153 = scmp.eq.s32.totalorder %s25, 0
      %p154 = por %p152, %p153
      %p155 = scmp.ne.s32.totalorder %s143, %s144
      %p156 = scmp.eq.s32.totalorder %s26, 7
      %p157 = por %p155, %p156
      %p159 = scmp.ne.s32.totalorder %s144, %s158
      %p160 = scmp.eq.s32.totalorder %s26, 0
      %p161 = por %p159, %p160
      %s163 = sadd.s32 %s162, 1
      %p166 = scmp.eq.s32.totalorder %s20, 7
      %p167 = scmp.ne.s32.totalorder %s162, %s164
      %p168 = scmp.eq.s32.totalorder %s20, 0
      %p169 = por %p167, %p168
      %p170 = scmp.ne.s32.totalorder %s162, %s164
      %p171 = scmp.eq.s32.totalorder %s25, 7
      %p172 = por %p170, %p171
      %p173 = scmp.ne.s32.totalorder %s164, %s165
      %p174 = scmp.eq.s32.totalorder %s25, 0
      %p175 = por %p173, %p174
      %p176 = scmp.ne.s32.totalorder %s164, %s165
      %p177 = scmp.eq.s32.totalorder %s26, 7
      %p178 = por %p176, %p177
      %p180 = scmp.ne.s32.totalorder %s165, %s179
      %p181 = scmp.eq.s32.totalorder %s26, 0
      %p182 = por %p180, %p181
      %s184 = sadd.s32 %s183, 1
      %p187 = scmp.eq.s32.totalorder %s20, 7
      %p188 = scmp.ne.s32.totalorder %s183, %s185
      %p189 = scmp.eq.s32.totalorder %s20, 0
      %p190 = por %p188, %p189
      %p191 = scmp.ne.s32.totalorder %s183, %s185
      %p192 = scmp.eq.s32.totalorder %s25, 7
      %p193 = por %p191, %p192
      %p194 = scmp.ne.s32.totalorder %s185, %s186
      %p195 = scmp.eq.s32.totalorder %s25, 0
      %p196 = por %p194, %p195
      %p197 = scmp.ne.s32.totalorder %s185, %s186
      %p198 = scmp.eq.s32.totalorder %s26, 7
      %p199 = por %p197, %p198
      %p201 = scmp.ne.s32.totalorder %s186, %s200
      %p202 = scmp.eq.s32.totalorder %s26, 0
      %p203 = por %p201, %p202
      %s205 = sadd.s32 %s204, 1
      %p208 = scmp.eq.s32.totalorder %s20, 7
      %p209 = scmp.ne.s32.totalorder %s204, %s206
      %p210 = scmp.eq.s32.totalorder %s20, 0
      %p211 = por %p209, %p210
      %p212 = scmp.ne.s32.totalorder %s204, %s206
      %p213 = scmp.eq.s32.totalorder %s25, 7
      %p214 = por %p212, %p213
      %p215 = scmp.ne.s32.totalorder %s206, %s207
      %p216 = scmp.eq.s32.totalorder %s25, 0
      %p217 = por %p215, %p216
      %p218 = scmp.ne.s32.totalorder %s206, %s207
      %p219 = scmp.eq.s32.totalorder %s26, 7
      %p220 = por %p218, %p219
      %p222 = scmp.ne.s32.totalorder %s207, %s221
      %p223 = scmp.eq.s32.totalorder %s26, 0
      %p224 = por %p222, %p223
      %s226 = sadd.s32 %s225, 1
      %p229 = scmp.eq.s32.totalorder %s20, 7
      %p230 = scmp.ne.s32.totalorder %s225, %s227
      %p231 = scmp.eq.s32.totalorder %s20, 0
      %p232 = por %p230, %p231
      %p233 = scmp.ne.s32.totalorder %s225, %s227
      %p234 = scmp.eq.s32.totalorder %s25, 7
      %p235 = por %p233, %p234
      %p236 = scmp.ne.s32.totalorder %s227, %s228
      %p237 = scmp.eq.s32.totalorder %s25, 0
      %p238 = por %p236, %p237
      %p239 = scmp.ne.s32.totalorder %s227, %s228
      %p240 = scmp.eq.s32.totalorder %s26, 7
      %p241 = por %p239, %p240
      %p243 = scmp.ne.s32.totalorder %s228, %s242
      %p244 = scmp.eq.s32.totalorder %s26, 0
      %p245 = por %p243, %p244
      %s247 = sadd.s32 %s246, 1
      %p250 = scmp.eq.s32.totalorder %s20, 7
      %p251 = scmp.ne.s32.totalorder %s246, %s248
      %p252 = scmp.eq.s32.totalorder %s20, 0
      %p253 = por %p251, %p252
      %p254 = scmp.ne.s32.totalorder %s246, %s248
      %p255 = scmp.eq.s32.totalorder %s25, 7
      %p256 = por %p254, %p255
      %p257 = scmp.ne.s32.totalorder %s248, %s249
      %p258 = scmp.eq.s32.totalorder %s25, 0
      %p259 = por %p257, %p258
      %p260 = scmp.ne.s32.totalorder %s248, %s249
      %p261 = scmp.eq.s32.totalorder %s26, 7
      %p262 = por %p260, %p261
      %p264 = scmp.ne.s32.totalorder %s249, %s263
      %p265 = scmp.eq.s32.totalorder %s26, 0
      %p266 = por %p264, %p265
      %s268 = sadd.s32 %s267, 1
      %p271 = scmp.eq.s32.totalorder %s20, 7
      %p272 = scmp.ne.s32.totalorder %s267, %s269
      %p273 = scmp.eq.s32.totalorder %s20, 0
      %p274 = por %p272, %p273
      %p275 = scmp.ne.s32.totalorder %s267, %s269
      %p276 = scmp.eq.s32.totalorder %s25, 7
      %p277 = por %p275, %p276
      %p278 = scmp.ne.s32.totalorder %s269, %s270
      %p279 = scmp.eq.s32.totalorder %s25, 0
      %p280 = por %p278, %p279
      %p281 = scmp.ne.s32.totalorder %s269, %s270
      %p282 = scmp.eq.s32.totalorder %s26, 7
      %p283 = por %p281, %p282
      %p285 = scmp.ne.s32.totalorder %s270, %s284
      %p286 = scmp.eq.s32.totalorder %s26, 0
      %p287 = por %p285, %p286
      %s289 = sadd.s32 %s288, 1
      %p292 = scmp.eq.s32.totalorder %s20, 7
      %p293 = scmp.ne.s32.totalorder %s288, %s290
      %p294 = scmp.eq.s32.totalorder %s20, 0
      %p295 = por %p293, %p294
      %p296 = scmp.ne.s32.totalorder %s288, %s290
      %p297 = scmp.eq.s32.totalorder %s25, 7
      %p298 = por %p296, %p297
      %p299 = scmp.ne.s32.totalorder %s290, %s291
      %p300 = scmp.eq.s32.totalorder %s25, 0
      %p301 = por %p299, %p300
      %p302 = scmp.ne.s32.totalorder %s290, %s291
      %p303 = scmp.eq.s32.totalorder %s26, 7
      %p304 = por %p302, %p303
      %p306 = scmp.ne.s32.totalorder %s291, %s305
      %p307 = scmp.eq.s32.totalorder %s26, 0
      %p308 = por %p306, %p307
      %s310 = sadd.s32 %s309, 1
      %p313 = scmp.eq.s32.totalorder %s20, 7
      %p314 = scmp.ne.s32.totalorder %s309, %s311
      %p315 = scmp.eq.s32.totalorder %s20, 0
      %p316 = por %p314, %p315
      %p317 = scmp.ne.s32.totalorder %s309, %s311
      %p318 = scmp.eq.s32.totalorder %s25, 7
      %p319 = por %p317, %p318
      %p320 = scmp.ne.s32.totalorder %s311, %s312
      %p321 = scmp.eq.s32.totalorder %s25, 0
      %p322 = por %p320, %p321
      %p323 = scmp.ne.s32.totalorder %s311, %s312
      %p324 = scmp.eq.s32.totalorder %s26, 7
      %p325 = por %p323, %p324
      %p327 = scmp.ne.s32.totalorder %s312, %s326
      %p328 = scmp.eq.s32.totalorder %s26, 0
      %p329 = por %p327, %p328
      %s331 = sadd.s32 %s330, 1
      %p334 = scmp.eq.s32.totalorder %s20, 7
      %p335 = scmp.ne.s32.totalorder %s330, %s332
      %p336 = scmp.eq.s32.totalorder %s20, 0
      %p337 = por %p335, %p336
      %p338 = scmp.ne.s32.totalorder %s330, %s332
      %p339 = scmp.eq.s32.totalorder %s25, 7
      %p340 = por %p338, %p339
      %p341 = scmp.ne.s32.totalorder %s332, %s333
      %p342 = scmp.eq.s32.totalorder %s25, 0
      %p343 = por %p341, %p342
      %p344 = scmp.ne.s32.totalorder %s332, %s333
      %p345 = scmp.eq.s32.totalorder %s26, 7
      %p346 = por %p344, %p345
      %p348 = scmp.ne.s32.totalorder %s333, %s347
      %p349 = scmp.eq.s32.totalorder %s26, 0
      %p350 = por %p348, %p349
      %s351 = ssub.s32 %s27, %s39
      %p352 = scmp.eq.s32.totalorder %s351, 0
      %s354 = sadd.s32 %s353, 1
      %s355 = scalar_select %p352, %s353, %s354
      %p358 = pneg %p352
      %p359 = scmp.eq.s32.totalorder %s20, 7
      %p360 = por %p358, %p359
      %p361 = scmp.ne.s32.totalorder %s353, %s356
      %p362 = scmp.eq.s32.totalorder %s20, 0
      %p363 = por %p361, %p362
      %p364 = scmp.ne.s32.totalorder %s353, %s356
      %p365 = scmp.eq.s32.totalorder %s25, 7
      %p366 = por %p364, %p365
      %p367 = scmp.ne.s32.totalorder %s356, %s357
      %p368 = scmp.eq.s32.totalorder %s25, 0
      %p369 = por %p367, %p368
      %p370 = scmp.ne.s32.totalorder %s356, %s357
      %p371 = scmp.eq.s32.totalorder %s26, 7
      %p372 = por %p370, %p371
      %p374 = scmp.ne.s32.totalorder %s357, %s373
      %p375 = scmp.eq.s32.totalorder %s26, 0
      %p376 = por %p374, %p375
      %p377 = scmp.le.s32.totalorder 1, %s20
      %p378 = scmp.lt.s32.totalorder %s20, 9
      %p379 = pnand %p377, %p378
      %p380 = pneg %p379
      // Predicated region
      $region9: #{tpu_custom_call.1} parent=5 // pred_check
        _
      $region10: #{tpu_custom_call.1} parent=5 // pred_check_branch
        %382 = sbr.rel (%p379) target = $region12
      $region11: #{tpu_custom_call.1} parent=5 // pred_region
        %s383 = ssub.s32 %s20, 1
        // Predicated region
        $region13: #{tpu_custom_call.1} parent=11 // pred_check
          %p384 = pneg %p133
        $region14: #{tpu_custom_call.1} parent=11 // pred_check_branch
          %386 = sbr.rel (%p384) target = $region16
        $region15: #{tpu_custom_call.1} parent=11 // pred_region
          _
        $region16: #{tpu_custom_call.1} parent=11 // pred_fallthru
          _
        // Predicated region
        $region17: #{tpu_custom_call.1} parent=11 // pred_check
          %p387 = pneg %p154
        $region18: #{tpu_custom_call.1} parent=11 // pred_check_branch
          %389 = sbr.rel (%p387) target = $region20
        $region19: #{tpu_custom_call.1} parent=11 // pred_region
          _
        $region20: #{tpu_custom_call.1} parent=11 // pred_fallthru
          _
        // Predicated region
        $region21: #{tpu_custom_call.1} parent=11 // pred_check
          %p390 = pneg %p175
        $region22: #{tpu_custom_call.1} parent=11 // pred_check_branch
          %392 = sbr.rel (%p390) target = $region24
        $region23: #{tpu_custom_call.1} parent=11 // pred_region
          _
        $region24: #{tpu_custom_call.1} parent=11 // pred_fallthru
          _
        // Predicated region
        $region25: #{tpu_custom_call.1} parent=11 // pred_check
          %p393 = pneg %p196
        $region26: #{tpu_custom_call.1} parent=11 // pred_check_branch
          %395 = sbr.rel (%p393) target = $region28
        $region27: #{tpu_custom_call.1} parent=11 // pred_region
          _
        $region28: #{tpu_custom_call.1} parent=11 // pred_fallthru
          _
        // Predicated region
        $region29: #{tpu_custom_call.1} parent=11 // pred_check
          %p396 = pneg %p217
        $region30: #{tpu_custom_call.1} parent=11 // pred_check_branch
          %398 = sbr.rel (%p396) target = $region32
        $region31: #{tpu_custom_call.1} parent=11 // pred_region
          _
        $region32: #{tpu_custom_call.1} parent=11 // pred_fallthru
          _
        // Predicated region
        $region33: #{tpu_custom_call.1} parent=11 // pred_check
          %p399 = pneg %p238
        $region34: #{tpu_custom_call.1} parent=11 // pred_check_branch
          %401 = sbr.rel (%p399) target = $region36
        $region35: #{tpu_custom_call.1} parent=11 // pred_region
          _
        $region36: #{tpu_custom_call.1} parent=11 // pred_fallthru
          _
        // Predicated region
        $region37: #{tpu_custom_call.1} parent=11 // pred_check
          %p402 = pneg %p259
        $region38: #{tpu_custom_call.1} parent=11 // pred_check_branch
          %404 = sbr.rel (%p402) target = $region40
        $region39: #{tpu_custom_call.1} parent=11 // pred_region
          _
        $region40: #{tpu_custom_call.1} parent=11 // pred_fallthru
          _
        // Predicated region
        $region41: #{tpu_custom_call.1} parent=11 // pred_check
          %p405 = pneg %p280
        $region42: #{tpu_custom_call.1} parent=11 // pred_check_branch
          %407 = sbr.rel (%p405) target = $region44
        $region43: #{tpu_custom_call.1} parent=11 // pred_region
          _
        $region44: #{tpu_custom_call.1} parent=11 // pred_fallthru
          _
        // Predicated region
        $region45: #{tpu_custom_call.1} parent=11 // pred_check
          %p408 = pneg %p301
        $region46: #{tpu_custom_call.1} parent=11 // pred_check_branch
          %410 = sbr.rel (%p408) target = $region48
        $region47: #{tpu_custom_call.1} parent=11 // pred_region
          _
        $region48: #{tpu_custom_call.1} parent=11 // pred_fallthru
          _
        // Predicated region
        $region49: #{tpu_custom_call.1} parent=11 // pred_check
          %p411 = pneg %p322
        $region50: #{tpu_custom_call.1} parent=11 // pred_check_branch
          %413 = sbr.rel (%p411) target = $region52
        $region51: #{tpu_custom_call.1} parent=11 // pred_region
          _
        $region52: #{tpu_custom_call.1} parent=11 // pred_fallthru
          _
        // Predicated region
        $region53: #{tpu_custom_call.1} parent=11 // pred_check
          %p414 = pneg %p343
        $region54: #{tpu_custom_call.1} parent=11 // pred_check_branch
          %416 = sbr.rel (%p414) target = $region56
        $region55: #{tpu_custom_call.1} parent=11 // pred_region
          _
        $region56: #{tpu_custom_call.1} parent=11 // pred_fallthru
          _
      $region12: #{tpu_custom_call.1} parent=5 // pred_fallthru
        _
      %p417 = scmp.lt.s32.totalorder %s20, 8
      // Predicated region
      $region57: #{tpu_custom_call.1} parent=5 // pred_check
        %p418 = pneg %p417
      $region58: #{tpu_custom_call.1} parent=5 // pred_check_branch
        %420 = sbr.rel (%p418) target = $region60
      $region59: #{tpu_custom_call.1} parent=5 // pred_region
        // Predicated region
        $region61: #{tpu_custom_call.1} parent=59 // pred_check
          %p421 = pneg %p54
        $region62: #{tpu_custom_call.1} parent=59 // pred_check_branch
          %423 = sbr.rel (%p421) target = $region64
        $region63: #{tpu_custom_call.1} parent=59 // pred_region
          %s424 = sand.u32 %s44, 1
          %s425 = sand.u32 %s44, 1
          %s426 = smul.addr %s425, 64
          %s427 = scalar_lea.vmem [#allocation3], %s426
          %s428 = smul.u32 8, %s27
          %s429 = smul.addr %s428, 2
          %s430 = sadd.s32 %s28, %s429
          %s431 = smul.addr %s430, 8
          %s432 = scalar_lea.vmem %s0, %s431
          // Predicated region
          $region65: #{tpu_custom_call.1} parent=63 // pred_check
            _
          $region66: #{tpu_custom_call.1} parent=63 // pred_check_branch
            %434 = sbr.rel (0) target = $region68
          $region67: #{tpu_custom_call.1} parent=63 // pred_region
            // Predicated region
            $region69: #{tpu_custom_call.1} parent=67 // pred_check
              _
            $region70: #{tpu_custom_call.1} parent=67 // pred_check_branch
              %436 = sbr.rel (0) target = $region72
            $region71: #{tpu_custom_call.1} parent=67 // pred_region
              // Predicated region
              $region84: #{tpu_custom_call.1} parent=71 // pred_check
                _
              $region85: #{tpu_custom_call.1} parent=71 // pred_check_branch
                %466 = sbr.rel (0) target = $region87
              $region86: #{tpu_custom_call.1} parent=71 // pred_region
                loop: start=0, step=1, limit=1
                $region88: #{tpu_custom_call.1} parent=86 // loop_pre_header
                  _
                $region89: #{tpu_custom_call.1} parent=86 // loop_header
                  %s468 = sphi 0, %s472
                  %p469 = scmp.ge.s32.totalorder %s468, 1
                  %s473 = sphi %s432, %s432
                  %s474 = sphi %s427, %s427
                $region90: #{tpu_custom_call.1} parent=86 // loop_header_branch
                  %471 = sbr.rel (%p469) target = $region94
                $region91: #{tpu_custom_call.1} parent=86 // loop_body
                  %v475 = vld [vmem:[%s473] sm:$0xff]
                  %476 = vst [vmem:[%s474] sm:$0xff] %v475
                  %v477 = vld [vmem:[%s473 + $0x10] sm:$0xff]
                  %478 = vst [vmem:[%s474 + $0x8] sm:$0xff] %v477
                  %v479 = vld [vmem:[%s473 + $0x20] sm:$0xff]
                  %480 = vst [vmem:[%s474 + $0x10] sm:$0xff] %v479
                  %v481 = vld [vmem:[%s473 + $0x30] sm:$0xff]
                  %482 = vst [vmem:[%s474 + $0x18] sm:$0xff] %v481
                  %v483 = vld [vmem:[%s473 + $0x40] sm:$0xff]
                  %484 = vst [vmem:[%s474 + $0x20] sm:$0xff] %v483
                  %v485 = vld [vmem:[%s473 + $0x50] sm:$0xff]
                  %486 = vst [vmem:[%s474 + $0x28] sm:$0xff] %v485
                  %v487 = vld [vmem:[%s473 + $0x60] sm:$0xff]
                  %488 = vst [vmem:[%s474 + $0x30] sm:$0xff] %v487
                  %v489 = vld [vmem:[%s473 + $0x70] sm:$0xff]
                  %490 = vst [vmem:[%s474 + $0x38] sm:$0xff] %v489
                $region92: #{tpu_custom_call.1} parent=86 // loop_footer
                  %s472 = sadd.s32 1, %s468
                $region93: #{tpu_custom_call.1} parent=86 // loop_footer_branch
                  %467 = sbr.rel target = $region89
                $region94: #{tpu_custom_call.1} parent=86 // loop_exit
                  _
              $region87: #{tpu_custom_call.1} parent=71 // pred_fallthru
                _
              // Predicated region
              $region95: #{tpu_custom_call.1} parent=71 // pred_check
                _
              $region96: #{tpu_custom_call.1} parent=71 // pred_check_branch
                %492 = sbr.rel target = $region98
              $region97: #{tpu_custom_call.1} parent=71 // pred_region
                _
              $region98: #{tpu_custom_call.1} parent=71 // pred_fallthru
                _
            $region72: #{tpu_custom_call.1} parent=67 // pred_fallthru
              _
            // Predicated region
            $region73: #{tpu_custom_call.1} parent=67 // pred_check
              _
            $region74: #{tpu_custom_call.1} parent=67 // pred_check_branch
              %438 = sbr.rel target = $region76
            $region75: #{tpu_custom_call.1} parent=67 // pred_region
              %s440 = ssub.s32 256, 1
              loop: start=0, step=1, limit=1
              $region77: #{tpu_custom_call.1} parent=75 // loop_pre_header
                _
              $region78: #{tpu_custom_call.1} parent=75 // loop_header
                %s442 = sphi 0, %s446
                %p443 = scmp.ge.s32.totalorder %s442, 1
                %s447 = sphi %s432, %s432
                %s448 = sphi %s427, %s427
              $region79: #{tpu_custom_call.1} parent=75 // loop_header_branch
                %445 = sbr.rel (%p443) target = $region83
              $region80: #{tpu_custom_call.1} parent=75 // loop_body
                %v449 = vld [vmem:[%s447] sm:%s440]
                %450 = vst [vmem:[%s448] sm:%s440] %v449
                %v451 = vld [vmem:[%s447 + $0x10] sm:%s440]
                %452 = vst [vmem:[%s448 + $0x8] sm:%s440] %v451
                %v453 = vld [vmem:[%s447 + $0x20] sm:%s440]
                %454 = vst [vmem:[%s448 + $0x10] sm:%s440] %v453
                %v455 = vld [vmem:[%s447 + $0x30] sm:%s440]
                %456 = vst [vmem:[%s448 + $0x18] sm:%s440] %v455
                %v457 = vld [vmem:[%s447 + $0x40] sm:%s440]
                %458 = vst [vmem:[%s448 + $0x20] sm:%s440] %v457
                %v459 = vld [vmem:[%s447 + $0x50] sm:%s440]
                %460 = vst [vmem:[%s448 + $0x28] sm:%s440] %v459
                %v461 = vld [vmem:[%s447 + $0x60] sm:%s440]
                %462 = vst [vmem:[%s448 + $0x30] sm:%s440] %v461
                %v463 = vld [vmem:[%s447 + $0x70] sm:%s440]
                %464 = vst [vmem:[%s448 + $0x38] sm:%s440] %v463
              $region81: #{tpu_custom_call.1} parent=75 // loop_footer
                %s446 = sadd.s32 1, %s442
              $region82: #{tpu_custom_call.1} parent=75 // loop_footer_branch
                %441 = sbr.rel target = $region78
              $region83: #{tpu_custom_call.1} parent=75 // loop_exit
                _
            $region76: #{tpu_custom_call.1} parent=67 // pred_fallthru
              _
          $region68: #{tpu_custom_call.1} parent=63 // pred_fallthru
            _
          %493 = vnop
        $region64: #{tpu_custom_call.1} parent=59 // pred_fallthru
          _
        // Predicated region
        $region99: #{tpu_custom_call.1} parent=59 // pred_check
          %p494 = pneg %p80
        $region100: #{tpu_custom_call.1} parent=59 // pred_check_branch
          %496 = sbr.rel (%p494) target = $region102
        $region101: #{tpu_custom_call.1} parent=59 // pred_region
          %s497 = smul.u32 16, %s28
          %p498 = scmp.lt.s32.totalorder %s497, 31
          %s499 = scalar_select %p498, %s497, 31
          %s500 = smul.addr %s499, 8
          %s501 = scalar_lea.vmem %s1, %s500
          %s502 = smul.u32 16, %s28
        $region102: #{tpu_custom_call.1} parent=59 // pred_fallthru
          _
        // Predicated region
        $region103: #{tpu_custom_call.1} parent=59 // pred_check
          %p503 = pneg %p106
        $region104: #{tpu_custom_call.1} parent=59 // pred_check_branch
          %505 = sbr.rel (%p503) target = $region106
        $region105: #{tpu_custom_call.1} parent=59 // pred_region
          %s506 = smul.u32 8, %s27
          %p507 = scmp.lt.s32.totalorder %s506, 31
          %s508 = scalar_select %p507, %s506, 31
          %s509 = smul.addr %s508, 8
          %s510 = scalar_lea.vmem %s2, %s509
          %s511 = smul.u32 8, %s27
        $region106: #{tpu_custom_call.1} parent=59 // pred_fallthru
          _
      $region60: #{tpu_custom_call.1} parent=5 // pred_fallthru
        _
      %p512 = scmp.le.s32.totalorder 1, %s20
      %p513 = scmp.lt.s32.totalorder %s20, 9
      %p514 = pnand %p512, %p513
      %p515 = pneg %p514
      // Predicated region
      $region107: #{tpu_custom_call.1} parent=5 // pred_check
        _
      $region108: #{tpu_custom_call.1} parent=5 // pred_check_branch
        %517 = sbr.rel (%p514) target = $region110
      $region109: #{tpu_custom_call.1} parent=5 // pred_region
        %s518 = ssub.s32 %s20, 1
        %s519 = sand.u32 %s47, 1
        %s520 = sand.u32 %s47, 1
        %s521 = smul.addr %s520, 64
        %s522 = scalar_lea.vmem [#allocation3], %s521
        // Predicated region
        $region111: #{tpu_custom_call.1} parent=109 // pred_check
          %p523 = pneg %p60
        $region112: #{tpu_custom_call.1} parent=109 // pred_check_branch
          %525 = sbr.rel (%p523) target = $region114
        $region113: #{tpu_custom_call.1} parent=109 // pred_region
          _
        $region114: #{tpu_custom_call.1} parent=109 // pred_fallthru
          _
        %s526 = sand.u32 %s47, 1
        %s527 = sand.u32 %s47, 1
        %s528 = smul.addr %s527, 64
        %s529 = scalar_lea.vmem [#allocation3], %s528
        %p530 = pneg %p60
        %p531 = pneg %p57
        %s532 = smul.u32 16, %s30
        %p533 = scmp.lt.s32.totalorder %s532, 31
        %s534 = scalar_select %p533, %s532, 31
        %s535 = smul.addr %s534, 8
        %s536 = scalar_lea.vmem %s1, %s535
        %p537 = pneg %p86
        %p538 = pneg %p83
        %s539 = smul.u32 8, %s29
        %p540 = scmp.lt.s32.totalorder %s539, 31
        %s541 = scalar_select %p540, %s539, 31
        %s542 = smul.addr %s541, 8
        %s543 = scalar_lea.vmem %s2, %s542
        %p544 = pneg %p112
        %p545 = pneg %p109
        %p546 = pneg %p133
        %p547 = pneg %p130
        %p548 = pneg %p154
        %p549 = pneg %p151
        %p550 = pneg %p175
        %p551 = pneg %p172
        %p552 = pneg %p196
        %p553 = pneg %p193
        %p554 = pneg %p217
        %p555 = pneg %p214
        %p556 = pneg %p238
        %p557 = pneg %p235
        %p558 = pneg %p259
        %p559 = pneg %p256
        %p560 = pneg %p280
        %p561 = pneg %p277
        %p562 = pneg %p301
        %p563 = pneg %p298
        %p564 = pneg %p322
        %p565 = pneg %p319
        %p566 = pneg %p343
        %p567 = pneg %p340
        %p568 = pneg %p369
        %p569 = pneg %p366
        %s570 = smul.u32 8, %s29
        %p571 = scmp.lt.s32.totalorder %s570, 31
        %s572 = scalar_select %p571, %s570, 31
        %s573 = smul.addr %s572, 8
        %s574 = scalar_lea.vmem %s14, %s573
        %s575 = smul.u32 8, %s29
        %s576 = smul.u32 16, %s30
        %p577 = scmp.lt.s32.totalorder %s576, 31
        %s578 = scalar_select %p577, %s576, 31
        %s579 = smul.addr %s578, 8
        %s580 = scalar_lea.vmem %s1, %s579
        %s581 = smul.u32 16, %s30
        %s582 = smul.u32 8, %s29
        %p583 = scmp.lt.s32.totalorder %s582, 31
        %s584 = scalar_select %p583, %s582, 31
        %s585 = smul.addr %s584, 8
        %s586 = scalar_lea.vmem %s2, %s585
        %s587 = smul.u32 8, %s29
        %s588 = smul.u32 8, %s29
        %p589 = scmp.lt.s32.totalorder %s588, 31
        %s590 = scalar_select %p589, %s588, 31
        %s591 = smul.addr %s590, 8
        %s592 = scalar_lea.vmem %s14, %s591
        %s593 = smul.u32 8, %s29
        %p594 = scmp.eq.s32.totalorder %s30, 0
        // Predicated region
        $region115: #{tpu_custom_call.1} parent=109 // pred_check
          %p595 = pneg %p594
        $region116: #{tpu_custom_call.1} parent=109 // pred_check_branch
          %597 = sbr.rel (%p595) target = $region118
        $region117: #{tpu_custom_call.1} parent=109 // pred_region
          %vm598 = vcmask 400384
          %599 = vst.msk [vmem:[#allocation2] sm:$0xff] %vm598, 0.0
          %600 = vst.msk [vmem:[#allocation2 + $0x8] sm:$0xff] %vm598, 0.0
          %601 = vst.msk [vmem:[#allocation2 + $0x10] sm:$0xff] %vm598, 0.0
          %602 = vst.msk [vmem:[#allocation2 + $0x18] sm:$0xff] %vm598, 0.0
          %603 = vst.msk [vmem:[#allocation2 + $0x20] sm:$0xff] %vm598, 0.0
          %604 = vst.msk [vmem:[#allocation2 + $0x28] sm:$0xff] %vm598, 0.0
          %605 = vst.msk [vmem:[#allocation2 + $0x30] sm:$0xff] %vm598, 0.0
          %606 = vst.msk [vmem:[#allocation2 + $0x38] sm:$0xff] %vm598, 0.0
        $region118: #{tpu_custom_call.1} parent=109 // pred_fallthru
          _
        %v607 = vld [vmem:[%s522] sm:$0xff]
        %v608 = vld [vmem:[%s522 + $0x8] sm:$0xff]
        %v609 = vld [vmem:[%s522 + $0x10] sm:$0xff]
        %v610 = vld [vmem:[%s522 + $0x18] sm:$0xff]
        %v611 = vld [vmem:[%s522 + $0x20] sm:$0xff]
        %v612 = vld [vmem:[%s522 + $0x28] sm:$0xff]
        %v613 = vld [vmem:[%s522 + $0x30] sm:$0xff]
        %v614 = vld [vmem:[%s522 + $0x38] sm:$0xff]
        %v615 = vld [vmem:[%s580] sm:$0xff]
        %v616 = vld [vmem:[%s580 + $0x8] sm:$0xff]
        %v617 = vld [vmem:[%s580 + $0x10] sm:$0xff]
        %v618 = vld [vmem:[%s580 + $0x18] sm:$0xff]
        %v619 = vld [vmem:[%s580 + $0x20] sm:$0xff]
        %v620 = vld [vmem:[%s580 + $0x28] sm:$0xff]
        %v621 = vld [vmem:[%s580 + $0x30] sm:$0xff]
        %v622 = vld [vmem:[%s580 + $0x38] sm:$0xff]
        %v623 = vld [vmem:[%s580 + $0x40] sm:$0xff]
        %v624 = vld [vmem:[%s580 + $0x48] sm:$0xff]
        %v625 = vld [vmem:[%s580 + $0x50] sm:$0xff]
        %v626 = vld [vmem:[%s580 + $0x58] sm:$0xff]
        %v627 = vld [vmem:[%s580 + $0x60] sm:$0xff]
        %v628 = vld [vmem:[%s580 + $0x68] sm:$0xff]
        %v629 = vld [vmem:[%s580 + $0x70] sm:$0xff]
        %v630 = vld [vmem:[%s580 + $0x78] sm:$0xff]
        %v631 = vld [vmem:[#allocation2] sm:$0xff]
        %v632 = vld [vmem:[#allocation2 + $0x8] sm:$0xff]
        %v633 = vld [vmem:[#allocation2 + $0x10] sm:$0xff]
        %v634 = vld [vmem:[#allocation2 + $0x18] sm:$0xff]
        %v635 = vld [vmem:[#allocation2 + $0x20] sm:$0xff]
        %v636 = vld [vmem:[#allocation2 + $0x28] sm:$0xff]
        %v637 = vld [vmem:[#allocation2 + $0x30] sm:$0xff]
        %v638 = vld [vmem:[#allocation2 + $0x38] sm:$0xff]
        %639 = vmatpush.msra.mxu0 %v630
        %640 = vmatpush.msra.mxu0 %v629
        %641 = vmatpush.msra.mxu0 %v628
        %642 = vmatpush.msra.mxu0 %v627
        %643 = vmatpush.msra.mxu0 %v626
        %644 = vmatpush.msra.mxu0 %v625
        %645 = vmatpush.msra.mxu0 %v624
        %646 = vmatpush.msra.mxu0 %v623
        %647 = vmatpush.msra.mxu0 %v622
        %648 = vmatpush.msra.mxu0 %v621
        %649 = vmatpush.msra.mxu0 %v620
        %650 = vmatpush.msra.mxu0 %v619
        %651 = vmatpush.msra.mxu0 %v618
        %652 = vmatpush.msra.mxu0 %v617
        %653 = vmatpush.msra.mxu0 %v616
        %654 = vmatpush.msra.mxu0 %v615
        %655 = vmatmul.f32.gmra.mxu0 %v607
        %v656 = vpop.f32.mrf.mxu0
        %v657 = vadd.f32 0.0, %v656
        %658 = vmatmul.f32.gmra.mxu0 %v608
        %v659 = vpop.f32.mrf.mxu0
        %v660 = vadd.f32 0.0, %v659
        %661 = vmatmul.f32.gmra.mxu0 %v609
        %v662 = vpop.f32.mrf.mxu0
        %v663 = vadd.f32 0.0, %v662
        %664 = vmatmul.f32.gmra.mxu0 %v610
        %v665 = vpop.f32.mrf.mxu0
        %v666 = vadd.f32 0.0, %v665
        %667 = vmatmul.f32.gmra.mxu0 %v611
        %v668 = vpop.f32.mrf.mxu0
        %v669 = vadd.f32 0.0, %v668
        %670 = vmatmul.f32.gmra.mxu0 %v612
        %v671 = vpop.f32.mrf.mxu0
        %v672 = vadd.f32 0.0, %v671
        %673 = vmatmul.f32.gmra.mxu0 %v613
        %v674 = vpop.f32.mrf.mxu0
        %v675 = vadd.f32 0.0, %v674
        %676 = vmatmul.f32.gmra.mxu0 %v614
        %v677 = vpop.f32.mrf.mxu0
        %v678 = vadd.f32 0.0, %v677
        %679 = vdwg.mxu0
        %v680 = vadd.f32 %v631, %v657
        %v681 = vadd.f32 %v632, %v660
        %v682 = vadd.f32 %v633, %v663
        %v683 = vadd.f32 %v634, %v666
        %v684 = vadd.f32 %v635, %v669
        %v685 = vadd.f32 %v636, %v672
        %v686 = vadd.f32 %v637, %v675
        %v687 = vadd.f32 %v638, %v678
        %vm688 = vcmask 130048
        %689 = vst.msk [vmem:[#allocation2] sm:$0xff] %vm688, %v680
        %690 = vst.msk [vmem:[#allocation2 + $0x8] sm:$0xff] %vm688, %v681
        %691 = vst.msk [vmem:[#allocation2 + $0x10] sm:$0xff] %vm688, %v682
        %692 = vst.msk [vmem:[#allocation2 + $0x18] sm:$0xff] %vm688, %v683
        %693 = vst.msk [vmem:[#allocation2 + $0x20] sm:$0xff] %vm688, %v684
        %694 = vst.msk [vmem:[#allocation2 + $0x28] sm:$0xff] %vm688, %v685
        %695 = vst.msk [vmem:[#allocation2 + $0x30] sm:$0xff] %vm688, %v686
        %696 = vst.msk [vmem:[#allocation2 + $0x38] sm:$0xff] %vm688, %v687
        %v697 = vmul.f32 %v615, %v615
        %v698 = vmul.f32 %v616, %v616
        %v699 = vmul.f32 %v617, %v617
        %v700 = vmul.f32 %v618, %v618
        %v701 = vmul.f32 %v619, %v619
        %v702 = vmul.f32 %v620, %v620
        %v703 = vmul.f32 %v621, %v621
        %v704 = vmul.f32 %v622, %v622
        %v705 = vmul.f32 %v623, %v623
        %v706 = vmul.f32 %v624, %v624
        %v707 = vmul.f32 %v625, %v625
        %v708 = vmul.f32 %v626, %v626
        %v709 = vmul.f32 %v627, %v627
        %v710 = vmul.f32 %v628, %v628
        %v711 = vmul.f32 %v629, %v629
        %v712 = vmul.f32 %v630, %v630
        %v713 = vld [vmem:[#allocation2] sm:$0xff]
        %v714 = vld [vmem:[#allocation2 + $0x8] sm:$0xff]
        %v715 = vld [vmem:[#allocation2 + $0x10] sm:$0xff]
        %v716 = vld [vmem:[#allocation2 + $0x18] sm:$0xff]
        %v717 = vld [vmem:[#allocation2 + $0x20] sm:$0xff]
        %v718 = vld [vmem:[#allocation2 + $0x28] sm:$0xff]
        %v719 = vld [vmem:[#allocation2 + $0x30] sm:$0xff]
        %v720 = vld [vmem:[#allocation2 + $0x38] sm:$0xff]
        %721 = vmatpush.msra.mxu0 %v712
        %722 = vmatpush.msra.mxu0 %v711
        %723 = vmatpush.msra.mxu0 %v710
        %724 = vmatpush.msra.mxu0 %v709
        %725 = vmatpush.msra.mxu0 %v708
        %726 = vmatpush.msra.mxu0 %v707
        %727 = vmatpush.msra.mxu0 %v706
        %728 = vmatpush.msra.mxu0 %v705
        %729 = vmatpush.msra.mxu0 %v704
        %730 = vmatpush.msra.mxu0 %v703
        %731 = vmatpush.msra.mxu0 %v702
        %732 = vmatpush.msra.mxu0 %v701
        %733 = vmatpush.msra.mxu0 %v700
        %734 = vmatpush.msra.mxu0 %v699
        %735 = vmatpush.msra.mxu0 %v698
        %736 = vmatpush.msra.mxu0 %v697
        %737 = vmatmul.f32.gmra.mxu0 %v607
        %v738 = vpop.f32.mrf.mxu0
        %v739 = vadd.f32 0.0, %v738
        %740 = vmatmul.f32.gmra.mxu0 %v608
        %v741 = vpop.f32.mrf.mxu0
        %v742 = vadd.f32 0.0, %v741
        %743 = vmatmul.f32.gmra.mxu0 %v609
        %v744 = vpop.f32.mrf.mxu0
        %v745 = vadd.f32 0.0, %v744
        %746 = vmatmul.f32.gmra.mxu0 %v610
        %v747 = vpop.f32.mrf.mxu0
        %v748 = vadd.f32 0.0, %v747
        %749 = vmatmul.f32.gmra.mxu0 %v611
        %v750 = vpop.f32.mrf.mxu0
        %v751 = vadd.f32 0.0, %v750
        %752 = vmatmul.f32.gmra.mxu0 %v612
        %v753 = vpop.f32.mrf.mxu0
        %v754 = vadd.f32 0.0, %v753
        %755 = vmatmul.f32.gmra.mxu0 %v613
        %v756 = vpop.f32.mrf.mxu0
        %v757 = vadd.f32 0.0, %v756
        %758 = vmatmul.f32.gmra.mxu0 %v614
        %v759 = vpop.f32.mrf.mxu0
        %v760 = vadd.f32 0.0, %v759
        %761 = vdwg.mxu0
        %770 = vrot.lane.b32.xlu0 %v739, 16
        %v771 = vpop.permute.xlu0 %770
        %772 = vrot.lane.b32.xlu0 %v742, 16
        %v773 = vpop.permute.xlu0 %772
        %774 = vrot.lane.b32.xlu0 %v745, 16
        %v775 = vpop.permute.xlu0 %774
        %776 = vrot.lane.b32.xlu0 %v748, 16
        %v777 = vpop.permute.xlu0 %776
        %778 = vrot.lane.b32.xlu0 %v751, 16
        %v779 = vpop.permute.xlu0 %778
        %780 = vrot.lane.b32.xlu0 %v754, 16
        %v781 = vpop.permute.xlu0 %780
        %782 = vrot.lane.b32.xlu0 %v757, 16
        %v783 = vpop.permute.xlu0 %782
        %784 = vrot.lane.b32.xlu0 %v760, 16
        %v785 = vpop.permute.xlu0 %784
        %v794 = vadd.f32 %v713, %v771
        %v795 = vadd.f32 %v714, %v773
        %v796 = vadd.f32 %v715, %v775
        %v797 = vadd.f32 %v716, %v777
        %v798 = vadd.f32 %v717, %v779
        %v799 = vadd.f32 %v718, %v781
        %v800 = vadd.f32 %v719, %v783
        %v801 = vadd.f32 %v720, %v785
        %vm802 = vcmask 261248
        %803 = vst.msk [vmem:[#allocation2] sm:$0xff] %vm802, %v794
        %804 = vst.msk [vmem:[#allocation2 + $0x8] sm:$0xff] %vm802, %v795
        %805 = vst.msk [vmem:[#allocation2 + $0x10] sm:$0xff] %vm802, %v796
        %806 = vst.msk [vmem:[#allocation2 + $0x18] sm:$0xff] %vm802, %v797
        %807 = vst.msk [vmem:[#allocation2 + $0x20] sm:$0xff] %vm802, %v798
        %808 = vst.msk [vmem:[#allocation2 + $0x28] sm:$0xff] %vm802, %v799
        %809 = vst.msk [vmem:[#allocation2 + $0x30] sm:$0xff] %vm802, %v800
        %810 = vst.msk [vmem:[#allocation2 + $0x38] sm:$0xff] %vm802, %v801
        %v811 = vmul.f32 %v697, %v615
        %v812 = vmul.f32 %v698, %v616
        %v813 = vmul.f32 %v699, %v617
        %v814 = vmul.f32 %v700, %v618
        %v815 = vmul.f32 %v701, %v619
        %v816 = vmul.f32 %v702, %v620
        %v817 = vmul.f32 %v703, %v621
        %v818 = vmul.f32 %v704, %v622
        %v819 = vmul.f32 %v705, %v623
        %v820 = vmul.f32 %v706, %v624
        %v821 = vmul.f32 %v707, %v625
        %v822 = vmul.f32 %v708, %v626
        %v823 = vmul.f32 %v709, %v627
        %v824 = vmul.f32 %v710, %v628
        %v825 = vmul.f32 %v711, %v629
        %v826 = vmul.f32 %v712, %v630
        %v827 = vld [vmem:[#allocation2] sm:$0xff]
        %v828 = vld [vmem:[#allocation2 + $0x8] sm:$0xff]
        %v829 = vld [vmem:[#allocation2 + $0x10] sm:$0xff]
        %v830 = vld [vmem:[#allocation2 + $0x18] sm:$0xff]
        %v831 = vld [vmem:[#allocation2 + $0x20] sm:$0xff]
        %v832 = vld [vmem:[#allocation2 + $0x28] sm:$0xff]
        %v833 = vld [vmem:[#allocation2 + $0x30] sm:$0xff]
        %v834 = vld [vmem:[#allocation2 + $0x38] sm:$0xff]
        %835 = vmatpush.msra.mxu0 %v826
        %836 = vmatpush.msra.mxu0 %v825
        %837 = vmatpush.msra.mxu0 %v824
        %838 = vmatpush.msra.mxu0 %v823
        %839 = vmatpush.msra.mxu0 %v822
        %840 = vmatpush.msra.mxu0 %v821
        %841 = vmatpush.msra.mxu0 %v820
        %842 = vmatpush.msra.mxu0 %v819
        %843 = vmatpush.msra.mxu0 %v818
        %844 = vmatpush.msra.mxu0 %v817
        %845 = vmatpush.msra.mxu0 %v816
        %846 = vmatpush.msra.mxu0 %v815
        %847 = vmatpush.msra.mxu0 %v814
        %848 = vmatpush.msra.mxu0 %v813
        %849 = vmatpush.msra.mxu0 %v812
        %850 = vmatpush.msra.mxu0 %v811
        %851 = vmatmul.f32.gmra.mxu0 %v607
        %v852 = vpop.f32.mrf.mxu0
        %v853 = vadd.f32 0.0, %v852
        %854 = vmatmul.f32.gmra.mxu0 %v608
        %v855 = vpop.f32.mrf.mxu0
        %v856 = vadd.f32 0.0, %v855
        %857 = vmatmul.f32.gmra.mxu0 %v609
        %v858 = vpop.f32.mrf.mxu0
        %v859 = vadd.f32 0.0, %v858
        %860 = vmatmul.f32.gmra.mxu0 %v610
        %v861 = vpop.f32.mrf.mxu0
        %v862 = vadd.f32 0.0, %v861
        %863 = vmatmul.f32.gmra.mxu0 %v611
        %v864 = vpop.f32.mrf.mxu0
        %v865 = vadd.f32 0.0, %v864
        %866 = vmatmul.f32.gmra.mxu0 %v612
        %v867 = vpop.f32.mrf.mxu0
        %v868 = vadd.f32 0.0, %v867
        %869 = vmatmul.f32.gmra.mxu0 %v613
        %v870 = vpop.f32.mrf.mxu0
        %v871 = vadd.f32 0.0, %v870
        %872 = vmatmul.f32.gmra.mxu0 %v614
        %v873 = vpop.f32.mrf.mxu0
        %v874 = vadd.f32 0.0, %v873
        %875 = vdwg.mxu0
        %884 = vrot.lane.b32.xlu0 %v853, 32
        %v885 = vpop.permute.xlu0 %884
        %886 = vrot.lane.b32.xlu0 %v856, 32
        %v887 = vpop.permute.xlu0 %886
        %888 = vrot.lane.b32.xlu0 %v859, 32
        %v889 = vpop.permute.xlu0 %888
        %890 = vrot.lane.b32.xlu0 %v862, 32
        %v891 = vpop.permute.xlu0 %890
        %892 = vrot.lane.b32.xlu0 %v865, 32
        %v893 = vpop.permute.xlu0 %892
        %894 = vrot.lane.b32.xlu0 %v868, 32
        %v895 = vpop.permute.xlu0 %894
        %896 = vrot.lane.b32.xlu0 %v871, 32
        %v897 = vpop.permute.xlu0 %896
        %898 = vrot.lane.b32.xlu0 %v874, 32
        %v899 = vpop.permute.xlu0 %898
        %v908 = vadd.f32 %v827, %v885
        %v909 = vadd.f32 %v828, %v887
        %v910 = vadd.f32 %v829, %v889
        %v911 = vadd.f32 %v830, %v891
        %v912 = vadd.f32 %v831, %v893
        %v913 = vadd.f32 %v832, %v895
        %v914 = vadd.f32 %v833, %v897
        %v915 = vadd.f32 %v834, %v899
        %vm916 = vcmask 392448
        %917 = vst.msk [vmem:[#allocation2] sm:$0xff] %vm916, %v908
        %918 = vst.msk [vmem:[#allocation2 + $0x8] sm:$0xff] %vm916, %v909
        %919 = vst.msk [vmem:[#allocation2 + $0x10] sm:$0xff] %vm916, %v910
        %920 = vst.msk [vmem:[#allocation2 + $0x18] sm:$0xff] %vm916, %v911
        %921 = vst.msk [vmem:[#allocation2 + $0x20] sm:$0xff] %vm916, %v912
        %922 = vst.msk [vmem:[#allocation2 + $0x28] sm:$0xff] %vm916, %v913
        %923 = vst.msk [vmem:[#allocation2 + $0x30] sm:$0xff] %vm916, %v914
        %924 = vst.msk [vmem:[#allocation2 + $0x38] sm:$0xff] %vm916, %v915
        %v925 = vld [vmem:[#allocation2] sm:$0xff]
        %v926 = vld [vmem:[#allocation2 + $0x8] sm:$0xff]
        %v927 = vld [vmem:[#allocation2 + $0x10] sm:$0xff]
        %v928 = vld [vmem:[#allocation2 + $0x18] sm:$0xff]
        %v929 = vld [vmem:[#allocation2 + $0x20] sm:$0xff]
        %v930 = vld [vmem:[#allocation2 + $0x28] sm:$0xff]
        %v931 = vld [vmem:[#allocation2 + $0x30] sm:$0xff]
        %v932 = vld [vmem:[#allocation2 + $0x38] sm:$0xff]
        %933 = vadd.xlane.f32.xlu0 %v607
        %v934 = vpop.xlane.xlu0 %933
        %935 = vadd.xlane.f32.xlu0 %v608
        %v936 = vpop.xlane.xlu0 %935
        %937 = vadd.xlane.f32.xlu0 %v609
        %v938 = vpop.xlane.xlu0 %937
        %939 = vadd.xlane.f32.xlu0 %v610
        %v940 = vpop.xlane.xlu0 %939
        %941 = vadd.xlane.f32.xlu0 %v611
        %v942 = vpop.xlane.xlu0 %941
        %943 = vadd.xlane.f32.xlu0 %v612
        %v944 = vpop.xlane.xlu0 %943
        %945 = vadd.xlane.f32.xlu0 %v613
        %v946 = vpop.xlane.xlu0 %945
        %947 = vadd.xlane.f32.xlu0 %v614
        %v948 = vpop.xlane.xlu0 %947
        %v949 = vadd.f32 %v925, %v934
        %v950 = vadd.f32 %v926, %v936
        %v951 = vadd.f32 %v927, %v938
        %v952 = vadd.f32 %v928, %v940
        %v953 = vadd.f32 %v929, %v942
        %v954 = vadd.f32 %v930, %v944
        %v955 = vadd.f32 %v931, %v946
        %v956 = vadd.f32 %v932, %v948
        %vm957 = vcmask 400768
        %958 = vst.msk [vmem:[#allocation2] sm:$0xff] %vm957, %v949
        %959 = vst.msk [vmem:[#allocation2 + $0x8] sm:$0xff] %vm957, %v950
        %960 = vst.msk [vmem:[#allocation2 + $0x10] sm:$0xff] %vm957, %v951
        %961 = vst.msk [vmem:[#allocation2 + $0x18] sm:$0xff] %vm957, %v952
        %962 = vst.msk [vmem:[#allocation2 + $0x20] sm:$0xff] %vm957, %v953
        %963 = vst.msk [vmem:[#allocation2 + $0x28] sm:$0xff] %vm957, %v954
        %964 = vst.msk [vmem:[#allocation2 + $0x30] sm:$0xff] %vm957, %v955
        %965 = vst.msk [vmem:[#allocation2 + $0x38] sm:$0xff] %vm957, %v956
        %p966 = scmp.eq.s32.totalorder %s30, 1
        // Predicated region
        $region119: #{tpu_custom_call.1} parent=109 // pred_check
          %p967 = pneg %p966
        $region120: #{tpu_custom_call.1} parent=109 // pred_check_branch
          %969 = sbr.rel (%p967) target = $region122
        $region121: #{tpu_custom_call.1} parent=109 // pred_region
          %v970 = vld [vmem:[#allocation2] sm:$0xff]
          %v971 = vld [vmem:[#allocation2 + $0x8] sm:$0xff]
          %v972 = vld [vmem:[#allocation2 + $0x10] sm:$0xff]
          %v973 = vld [vmem:[#allocation2 + $0x18] sm:$0xff]
          %v974 = vld [vmem:[#allocation2 + $0x20] sm:$0xff]
          %v975 = vld [vmem:[#allocation2 + $0x28] sm:$0xff]
          %v976 = vld [vmem:[#allocation2 + $0x30] sm:$0xff]
          %v977 = vld [vmem:[#allocation2 + $0x38] sm:$0xff]
          %v978 = vld [vmem:[%s586] sm:$0xff]
          %v979 = vld [vmem:[%s586 + $0x8] sm:$0xff]
          %v980 = vld [vmem:[%s586 + $0x10] sm:$0xff]
          %v981 = vld [vmem:[%s586 + $0x18] sm:$0xff]
          %v982 = vld [vmem:[%s586 + $0x20] sm:$0xff]
          %v983 = vld [vmem:[%s586 + $0x28] sm:$0xff]
          %v984 = vld [vmem:[%s586 + $0x30] sm:$0xff]
          %v985 = vld [vmem:[%s586 + $0x38] sm:$0xff]
          %v986 = vld [vmem:[%s3] sm:$0x1]
          %v988 = vperm.slane %v986, 0
          %v990 = vmul.f32 %v978, %v988
          %v991 = vmul.f32 %v979, %v988
          %v992 = vmul.f32 %v980, %v988
          %v993 = vmul.f32 %v981, %v988
          %v994 = vmul.f32 %v982, %v988
          %v995 = vmul.f32 %v983, %v988
          %v996 = vmul.f32 %v984, %v988
          %v997 = vmul.f32 %v985, %v988
          %v998 = vld [vmem:[%s4] sm:$0x1]
          %v1000 = vperm.slane %v998, 0
          %v1002 = vadd.f32 %v990, %v1000
          %v1003 = vadd.f32 %v991, %v1000
          %v1004 = vadd.f32 %v992, %v1000
          %v1005 = vadd.f32 %v993, %v1000
          %v1006 = vadd.f32 %v994, %v1000
          %v1007 = vadd.f32 %v995, %v1000
          %v1008 = vadd.f32 %v996, %v1000
          %v1009 = vadd.f32 %v997, %v1000
          %v1010 = vld [vmem:[%s5] sm:$0x1]
          %v1012 = vperm.slane %v1010, 0
          %v1014 = vmul.f32 %v970, %v1012
          %v1015 = vmul.f32 %v971, %v1012
          %v1016 = vmul.f32 %v972, %v1012
          %v1017 = vmul.f32 %v973, %v1012
          %v1018 = vmul.f32 %v974, %v1012
          %v1019 = vmul.f32 %v975, %v1012
          %v1020 = vmul.f32 %v976, %v1012
          %v1021 = vmul.f32 %v977, %v1012
          %v1022 = vld [vmem:[%s6] sm:$0x1]
          %v1024 = vperm.slane %v1022, 0
          %v1026 = vadd.f32 %v1014, %v1024
          %v1027 = vadd.f32 %v1015, %v1024
          %v1028 = vadd.f32 %v1016, %v1024
          %v1029 = vadd.f32 %v1017, %v1024
          %v1030 = vadd.f32 %v1018, %v1024
          %v1031 = vadd.f32 %v1019, %v1024
          %v1032 = vadd.f32 %v1020, %v1024
          %v1033 = vadd.f32 %v1021, %v1024
          %v1034 = vld [vmem:[%s7] sm:$0xff]
          %v1035 = vld [vmem:[%s7 + $0x8] sm:$0xff]
          %v1036 = vld [vmem:[%s8] sm:$0xff]
          %v1037 = vld [vmem:[%s8 + $0x8] sm:$0xff]
          %v1038 = vld [vmem:[%s8 + $0x10] sm:$0xff]
          %v1039 = vld [vmem:[%s8 + $0x18] sm:$0xff]
          %v1040 = vld [vmem:[%s8 + $0x20] sm:$0xff]
          %v1041 = vld [vmem:[%s8 + $0x28] sm:$0xff]
          %v1042 = vld [vmem:[%s8 + $0x30] sm:$0x1]
          %vm1043 = vcmask 400384
          %v1045 = vsel %vm1043, %v1026, 0
          %v1048 = vsel %vm1043, %v1027, 0
          %v1051 = vsel %vm1043, %v1028, 0
          %v1054 = vsel %vm1043, %v1029, 0
          %v1057 = vsel %vm1043, %v1030, 0
          %v1060 = vsel %vm1043, %v1031, 0
          %v1063 = vsel %vm1043, %v1032, 0
          %v1066 = vsel %vm1043, %v1033, 0
          %vm1068 = vcmask 1040384
          %v1070 = vsel %vm1068, %v1042, 0
          %1072 = vmatpush.msra.mxu0 0.0
          %1073 = vmatpush.msra.mxu0 0.0
          %1074 = vmatpush.msra.mxu0 0.0
          %1075 = vmatpush.msra.mxu0 0.0
          %1076 = vmatpush.msra.mxu0 0.0
          %1077 = vmatpush.msra.mxu0 0.0
          %1078 = vmatpush.msra.mxu0 0.0
          %1079 = vmatpush.msra.mxu0 0.0
          %1080 = vmatpush.msra.mxu0 0.0
          %1081 = vmatpush.msra.mxu0 %v1070
          %1082 = vmatpush.msra.mxu0 %v1041
          %1083 = vmatpush.msra.mxu0 %v1040
          %1084 = vmatpush.msra.mxu0 %v1039
          %1085 = vmatpush.msra.mxu0 %v1038
          %1086 = vmatpush.msra.mxu0 %v1037
          %1087 = vmatpush.msra.mxu0 %v1036
          %1088 = vmatmul.f32.gmra.mxu0 %v1045
          %v1089 = vpop.f32.mrf.mxu0
          %v1090 = vadd.f32 0.0, %v1089
          %1091 = vmatmul.f32.gmra.mxu0 %v1048
          %v1092 = vpop.f32.mrf.mxu0
          %v1093 = vadd.f32 0.0, %v1092
          %1094 = vmatmul.f32.gmra.mxu0 %v1051
          %v1095 = vpop.f32.mrf.mxu0
          %v1096 = vadd.f32 0.0, %v1095
          %1097 = vmatmul.f32.gmra.mxu0 %v1054
          %v1098 = vpop.f32.mrf.mxu0
          %v1099 = vadd.f32 0.0, %v1098
          %1100 = vmatmul.f32.gmra.mxu0 %v1057
          %v1101 = vpop.f32.mrf.mxu0
          %v1102 = vadd.f32 0.0, %v1101
          %1103 = vmatmul.f32.gmra.mxu0 %v1060
          %v1104 = vpop.f32.mrf.mxu0
          %v1105 = vadd.f32 0.0, %v1104
          %1106 = vmatmul.f32.gmra.mxu0 %v1063
          %v1107 = vpop.f32.mrf.mxu0
          %v1108 = vadd.f32 0.0, %v1107
          %1109 = vmatmul.f32.gmra.mxu0 %v1066
          %v1110 = vpop.f32.mrf.mxu0
          %v1111 = vadd.f32 0.0, %v1110
          %1112 = vdwg.mxu0
          %v1114 = vsel %vm688, %v1002, 0
          %v1117 = vsel %vm688, %v1003, 0
          %v1120 = vsel %vm688, %v1004, 0
          %v1123 = vsel %vm688, %v1005, 0
          %v1126 = vsel %vm688, %v1006, 0
          %v1129 = vsel %vm688, %v1007, 0
          %v1132 = vsel %vm688, %v1008, 0
          %v1135 = vsel %vm688, %v1009, 0
          %1137 = vmatpush.msra.mxu0 0.0
          %1138 = vmatpush.msra.mxu0 0.0
          %1139 = vmatpush.msra.mxu0 0.0
          %1140 = vmatpush.msra.mxu0 0.0
          %1141 = vmatpush.msra.mxu0 0.0
          %1142 = vmatpush.msra.mxu0 0.0
          %1143 = vmatpush.msra.mxu0 0.0
          %1144 = vmatpush.msra.mxu0 0.0
          %1145 = vmatpush.msra.mxu0 0.0
          %1146 = vmatpush.msra.mxu0 0.0
          %1147 = vmatpush.msra.mxu0 0.0
          %1148 = vmatpush.msra.mxu0 0.0
          %1149 = vmatpush.msra.mxu0 0.0
          %1150 = vmatpush.msra.mxu0 0.0
          %1151 = vmatpush.msra.mxu0 %v1035
          %1152 = vmatpush.msra.mxu0 %v1034
          %1153 = vmatmul.f32.gmra.mxu0 %v1114
          %v1154 = vpop.f32.mrf.mxu0
          %v1155 = vadd.f32 %v1090, %v1154
          %1156 = vmatmul.f32.gmra.mxu0 %v1117
          %v1157 = vpop.f32.mrf.mxu0
          %v1158 = vadd.f32 %v1093, %v1157
          %1159 = vmatmul.f32.gmra.mxu0 %v1120
          %v1160 = vpop.f32.mrf.mxu0
          %v1161 = vadd.f32 %v1096, %v1160
          %1162 = vmatmul.f32.gmra.mxu0 %v1123
          %v1163 = vpop.f32.mrf.mxu0
          %v1164 = vadd.f32 %v1099, %v1163
          %1165 = vmatmul.f32.gmra.mxu0 %v1126
          %v1166 = vpop.f32.mrf.mxu0
          %v1167 = vadd.f32 %v1102, %v1166
          %1168 = vmatmul.f32.gmra.mxu0 %v1129
          %v1169 = vpop.f32.mrf.mxu0
          %v1170 = vadd.f32 %v1105, %v1169
          %1171 = vmatmul.f32.gmra.mxu0 %v1132
          %v1172 = vpop.f32.mrf.mxu0
          %v1173 = vadd.f32 %v1108, %v1172
          %1174 = vmatmul.f32.gmra.mxu0 %v1135
          %v1175 = vpop.f32.mrf.mxu0
          %v1176 = vadd.f32 %v1111, %v1175
          %1177 = vdwg.mxu0
          %v1178 = vld [vmem:[%s9] sm:$0x1]
          %v1180 = vperm.slane %v1178, 0
          %v1182 = vadd.f32 %v1155, %v1180
          %v1183 = vadd.f32 %v1158, %v1180
          %v1184 = vadd.f32 %v1161, %v1180
          %v1185 = vadd.f32 %v1164, %v1180
          %v1186 = vadd.f32 %v1167, %v1180
          %v1187 = vadd.f32 %v1170, %v1180
          %v1188 = vadd.f32 %v1173, %v1180
          %v1189 = vadd.f32 %v1176, %v1180
          %v1190 = vld [vmem:[%s10] sm:$0x1]
          %v1192 = vperm.slane %v1190, 0
          %v1194 = vmul.f32 %v1182, %v1192
          %v1195 = vmul.f32 %v1183, %v1192
          %v1196 = vmul.f32 %v1184, %v1192
          %v1197 = vmul.f32 %v1185, %v1192
          %v1198 = vmul.f32 %v1186, %v1192
          %v1199 = vmul.f32 %v1187, %v1192
          %v1200 = vmul.f32 %v1188, %v1192
          %v1201 = vmul.f32 %v1189, %v1192
          %v1202 = vld [vmem:[%s11] sm:$0x1]
          %v1204 = vperm.slane %v1202, 0
          %v1206 = vadd.f32 %v1194, %v1204
          %v1207 = vadd.f32 %v1195, %v1204
          %v1208 = vadd.f32 %v1196, %v1204
          %v1209 = vadd.f32 %v1197, %v1204
          %v1210 = vadd.f32 %v1198, %v1204
          %v1211 = vadd.f32 %v1199, %v1204
          %v1212 = vadd.f32 %v1200, %v1204
          %v1213 = vadd.f32 %v1201, %v1204
          %v1214 = vmax.f32 %v1206, 0.0
          %v1215 = vmax.f32 %v1207, 0.0
          %v1216 = vmax.f32 %v1208, 0.0
          %v1217 = vmax.f32 %v1209, 0.0
          %v1218 = vmax.f32 %v1210, 0.0
          %v1219 = vmax.f32 %v1211, 0.0
          %v1220 = vmax.f32 %v1212, 0.0
          %v1221 = vmax.f32 %v1213, 0.0
          %v1222 = vld [vmem:[%s12] sm:$0xff]
          %v1223 = vld [vmem:[%s12 + $0x8] sm:$0xff]
          %v1224 = vld [vmem:[%s12 + $0x10] sm:$0xff]
          %v1225 = vld [vmem:[%s12 + $0x18] sm:$0xff]
          %v1226 = vld [vmem:[%s13] sm:$0x1]
          %v1228 = vperm.slane %v1226, 0
          %vm1230 = vcmask 261120
          %v1232 = vsel %vm1230, %v1214, 0
          %v1235 = vsel %vm1230, %v1215, 0
          %v1238 = vsel %vm1230, %v1216, 0
          %v1241 = vsel %vm1230, %v1217, 0
          %v1244 = vsel %vm1230, %v1218, 0
          %v1247 = vsel %vm1230, %v1219, 0
          %v1250 = vsel %vm1230, %v1220, 0
          %v1253 = vsel %vm1230, %v1221, 0
          %1255 = vmatpush.msra.mxu0 0.0
          %1256 = vmatpush.msra.mxu0 0.0
          %1257 = vmatpush.msra.mxu0 0.0
          %1258 = vmatpush.msra.mxu0 0.0
          %1259 = vmatpush.msra.mxu0 0.0
          %1260 = vmatpush.msra.mxu0 0.0
          %1261 = vmatpush.msra.mxu0 0.0
          %1262 = vmatpush.msra.mxu0 0.0
          %1263 = vmatpush.msra.mxu0 0.0
          %1264 = vmatpush.msra.mxu0 0.0
          %1265 = vmatpush.msra.mxu0 0.0
          %1266 = vmatpush.msra.mxu0 0.0
          %1267 = vmatpush.msra.mxu0 %v1225
          %1268 = vmatpush.msra.mxu0 %v1224
          %1269 = vmatpush.msra.mxu0 %v1223
          %1270 = vmatpush.msra.mxu0 %v1222
          %1271 = vmatmul.f32.gmra.mxu0 %v1232
          %v1272 = vpop.f32.mrf.mxu0
          %v1273 = vadd.f32 %v1228, %v1272
          %1274 = vmatmul.f32.gmra.mxu0 %v1235
          %v1275 = vpop.f32.mrf.mxu0
          %v1276 = vadd.f32 %v1228, %v1275
          %1277 = vmatmul.f32.gmra.mxu0 %v1238
          %v1278 = vpop.f32.mrf.mxu0
          %v1279 = vadd.f32 %v1228, %v1278
          %1280 = vmatmul.f32.gmra.mxu0 %v1241
          %v1281 = vpop.f32.mrf.mxu0
          %v1282 = vadd.f32 %v1228, %v1281
          %1283 = vmatmul.f32.gmra.mxu0 %v1244
          %v1284 = vpop.f32.mrf.mxu0
          %v1285 = vadd.f32 %v1228, %v1284
          %1286 = vmatmul.f32.gmra.mxu0 %v1247
          %v1287 = vpop.f32.mrf.mxu0
          %v1288 = vadd.f32 %v1228, %v1287
          %1289 = vmatmul.f32.gmra.mxu0 %v1250
          %v1290 = vpop.f32.mrf.mxu0
          %v1291 = vadd.f32 %v1228, %v1290
          %1292 = vmatmul.f32.gmra.mxu0 %v1253
          %v1293 = vpop.f32.mrf.mxu0
          %v1294 = vadd.f32 %v1228, %v1293
          %1295 = vdwg.mxu0
          %v1296 = vmax.f32 %v1273, 0.0
          %v1297 = vmax.f32 %v1276, 0.0
          %v1298 = vmax.f32 %v1279, 0.0
          %v1299 = vmax.f32 %v1282, 0.0
          %v1300 = vmax.f32 %v1285, 0.0
          %v1301 = vmax.f32 %v1288, 0.0
          %v1302 = vmax.f32 %v1291, 0.0
          %v1303 = vmax.f32 %v1294, 0.0
          %1304 = vst.msk [vmem:[%s592] sm:$0xff] %vm688, %v1296
          %1305 = vst.msk [vmem:[%s592 + $0x8] sm:$0xff] %vm688, %v1297
          %1306 = vst.msk [vmem:[%s592 + $0x10] sm:$0xff] %vm688, %v1298
          %1307 = vst.msk [vmem:[%s592 + $0x18] sm:$0xff] %vm688, %v1299
          %1308 = vst.msk [vmem:[%s592 + $0x20] sm:$0xff] %vm688, %v1300
          %1309 = vst.msk [vmem:[%s592 + $0x28] sm:$0xff] %vm688, %v1301
          %1310 = vst.msk [vmem:[%s592 + $0x30] sm:$0xff] %vm688, %v1302
          %1311 = vst.msk [vmem:[%s592 + $0x38] sm:$0xff] %vm688, %v1303
        $region122: #{tpu_custom_call.1} parent=109 // pred_fallthru
          _
        %s1312 = smul.u32 8, %s29
        %p1313 = scmp.lt.s32.totalorder %s1312, 31
        %s1314 = scalar_select %p1313, %s1312, 31
        %s1315 = smul.addr %s1314, 8
        %s1316 = scalar_lea.vmem %s14, %s1315
        // Predicated region
        $region123: #{tpu_custom_call.1} parent=109 // pred_check
          %p1317 = pneg %p366
        $region124: #{tpu_custom_call.1} parent=109 // pred_check_branch
          %1319 = sbr.rel (%p1317) target = $region126
        $region125: #{tpu_custom_call.1} parent=109 // pred_region
          %s1320 = smul.u32 8, %s29
        $region126: #{tpu_custom_call.1} parent=109 // pred_fallthru
          _
      $region110: #{tpu_custom_call.1} parent=5 // pred_fallthru
        _
      %p1321 = scmp.le.s32.totalorder 2, %s20
      // Predicated region
      $region127: #{tpu_custom_call.1} parent=5 // pred_check
        %p1322 = pneg %p1321
      $region128: #{tpu_custom_call.1} parent=5 // pred_check_branch
        %1324 = sbr.rel (%p1322) target = $region130
      $region129: #{tpu_custom_call.1} parent=5 // pred_region
        %s1325 = ssub.s32 %s20, 2
        // Predicated region
        $region131: #{tpu_custom_call.1} parent=129 // pred_check
          %p1326 = pneg %p372
        $region132: #{tpu_custom_call.1} parent=129 // pred_check_branch
          %1328 = sbr.rel (%p1326) target = $region134
        $region133: #{tpu_custom_call.1} parent=129 // pred_region
          %s1329 = smul.u32 8, %s31
          %p1330 = scmp.lt.s32.totalorder %s1329, 31
          %s1331 = scalar_select %p1330, %s1329, 31
          %s1332 = smul.addr %s1331, 8
          %s1333 = scalar_lea.vmem %s14, %s1332
        $region134: #{tpu_custom_call.1} parent=129 // pred_fallthru
          _
      $region130: #{tpu_custom_call.1} parent=5 // pred_fallthru
        _
    $region6: #{tpu_custom_call.1} parent=1 // loop_footer
      %s24 = sadd.s32 1, %s20
    $region7: #{tpu_custom_call.1} parent=1 // loop_footer_branch
      %19 = sbr.rel target = $region3
    $region8: #{tpu_custom_call.1} parent=1 // loop_exit
      _

</llo_original>
